<compile_context>
chip_gen: v6e
topology: v6e:2x2x1
jax: 0.10.0
libtpu: 0.0.40
codegen_flags: <defaults>
</compile_context>

<pallas_src>
import functools

import jax
import jax.numpy as jnp
from jax.experimental import pallas as pl
from jax.experimental.pallas import tpu as pltpu

EPS = 1e-5
NEG_SLOPE = 0.01                      # torch.nn.functional.leaky_relu default
F_IN, F1, F2, F_OUT = 5, 512, 128, 3
OUT_PAD = 128                         # lane-dense padded width of fc3 output


def _leaky_relu(x):
    return jnp.where(x >= 0, x, NEG_SLOPE * x)


# ---------------------------------------------------------------------------
# Pass 1: fc1 + leaky_relu, plus masked per-tile batch statistics (sum, sum^2)
# ---------------------------------------------------------------------------
def _fc1_kernel(x_ref, m_ref, w1_ref, b1_ref, h1_ref, st_ref):
    # K=5 contraction: negligible FLOPs, a single MXU push per tile is fine.
    h = jnp.dot(x_ref[...], w1_ref[...],
                preferred_element_type=jnp.float32) + b1_ref[...]
    h = _leaky_relu(h)
    h1_ref[...] = h.astype(h1_ref.dtype)
    hm = h * m_ref[...]                                # zero out padded rows
    s = jnp.sum(hm, axis=0, keepdims=True)             # (1, F1)
    ss = jnp.sum(hm * h, axis=0, keepdims=True)        # (1, F1) = sum(mask*h^2)
    st_ref[...] = jnp.concatenate([s, ss], axis=0)[None]


# ---------------------------------------------------------------------------
# Pass 2: folded BN1 (h*scale+shift) + fc2 + leaky_relu, plus BN2 statistics
# ---------------------------------------------------------------------------
def _mid_kernel(h1_ref, m_ref, sc_ref, sh_ref, w2_ref, b2_ref, h2_ref, st_ref):
    a = h1_ref[...] * sc_ref[...] + sh_ref[...]        # fused BN apply (f32)
    a = a.astype(w2_ref.dtype)                         # bf16 MXU operand (opt.)
    h = jnp.dot(a, w2_ref[...],
                preferred_element_type=jnp.float32) + b2_ref[...]
    h = _leaky_relu(h)
    h2_ref[...] = h.astype(h2_ref.dtype)
    hm = h * m_ref[...]
    s = jnp.sum(hm, axis=0, keepdims=True)             # (1, F2)
    ss = jnp.sum(hm * h, axis=0, keepdims=True)        # (1, F2)
    st_ref[...] = jnp.concatenate([s, ss], axis=0)[None]


# ---------------------------------------------------------------------------
# Pass 3: folded BN2 + fc3 (padded to a lane-dense 128-wide output)
# ---------------------------------------------------------------------------
def _out_kernel(h2_ref, sc_ref, sh_ref, w3_ref, b3_ref, o_ref):
    a = h2_ref[...] * sc_ref[...] + sh_ref[...]
    a = a.astype(w3_ref.dtype)
    o = jnp.dot(a, w3_ref[...],
                preferred_element_type=jnp.float32) + b3_ref[...]
    o_ref[...] = o.astype(o_ref.dtype)


def _fold_bn(stats, n_valid, gamma, beta):
    """Reduce per-tile (sum, sumsq) and fold BN into per-feature scale/shift."""
    tot = jnp.sum(stats, axis=0)                       # (2, F)
    mean = tot[0] / n_valid
    var = jnp.maximum(tot[1] / n_valid - mean * mean, 0.0)   # biased variance
    scale = gamma * jax.lax.rsqrt(var + EPS)           # (1, F)
    shift = beta - mean * scale                        # (1, F)
    return scale, shift


@functools.partial(jax.jit, static_argnames=("tile_b", "use_bf16_mxu"))
def dynamics_forward(x, params, *, tile_b=128, use_bf16_mxu=True):
    (w1, b1, g1, be1, w2, b2, g2, be2, w3, b3) = params
    B = x.shape[0]
    nb = pl.cdiv(B, tile_b)
    b_pad = nb * tile_b

    # Pad the batch to a whole number of tiles; padded rows are masked out of
    # the BatchNorm statistics and sliced off at the end.
    x_p = jnp.zeros((b_pad, F_IN), jnp.float32).at[:B].set(x.astype(jnp.float32))
    mask = (jnp.arange(b_pad) < B).astype(jnp.float32)[:, None]   # (b_pad, 1)

    mxu_dt = jnp.bfloat16 if use_bf16_mxu else jnp.float32
    w2c = w2.astype(mxu_dt)
    # Lane-dense fc3: zero-pad the 3-wide output to 128 columns.
    w3p = jnp.zeros((F2, OUT_PAD), jnp.float32).at[:, :F_OUT].set(w3).astype(mxu_dt)
    b3p = jnp.zeros((1, OUT_PAD), jnp.float32).at[:, :F_OUT].set(b3)

    cp = pltpu.CompilerParams(dimension_semantics=("parallel",))

    def tiled(cols):                 # batch-tiled rows
        return pl.BlockSpec((tile_b, cols), lambda i: (i, 0))

    def whole(rows, cols):           # weights / per-feature vectors (same block)
        return pl.BlockSpec((rows, cols), lambda i: (0, 0))

    def stat_spec(cols):             # per-tile (sum, sumsq) rows
        return pl.BlockSpec((1, 2, cols), lambda i: (i, 0, 0))

    bs = 4  # bytes per f32

    # ---- pass 1: fc1 + leaky_relu + BN1 statistics -------------------------
    h1, st1 = pl.pallas_call(
        _fc1_kernel,
        grid=(nb,),
        in_specs=[tiled(F_IN), tiled(1), whole(F_IN, F1), whole(1, F1)],
        out_specs=(tiled(F1), stat_spec(F1)),
        out_shape=(jax.ShapeDtypeStruct((b_pad, F1), jnp.float32),
                   jax.ShapeDtypeStruct((nb, 2, F1), jnp.float32)),
        compiler_params=cp,
        cost_estimate=pl.CostEstimate(
            flops=2 * b_pad * F_IN * F1 + 6 * b_pad * F1,
            transcendentals=0,
            bytes_accessed=(b_pad * F_IN + F_IN * F1 + F1 + b_pad
                            + b_pad * F1 + nb * 2 * F1) * bs),
    )(x_p, mask, w1, b1)

    sc1, sh1 = _fold_bn(st1, B, g1, be1)

    # ---- pass 2: BN1 apply + fc2 + leaky_relu + BN2 statistics -------------
    h2, st2 = pl.pallas_call(
        _mid_kernel,
        grid=(nb,),
        in_specs=[tiled(F1), tiled(1), whole(1, F1), whole(1, F1),
                  whole(F1, F2), whole(1, F2)],
        out_specs=(tiled(F2), stat_spec(F2)),
        out_shape=(jax.ShapeDtypeStruct((b_pad, F2), jnp.float32),
                   jax.ShapeDtypeStruct((nb, 2, F2), jnp.float32)),
        compiler_params=cp,
        cost_estimate=pl.CostEstimate(
            flops=2 * b_pad * F1 * F2 + 2 * b_pad * F1 + 6 * b_pad * F2,
            transcendentals=0,
            bytes_accessed=(b_pad * F1 + F1 * F2 + 3 * F1 + F2 + b_pad
                            + b_pad * F2 + nb * 2 * F2) * bs),
    )(h1, mask, sc1, sh1, w2c, b2)

    sc2, sh2 = _fold_bn(st2, B, g2, be2)

    # ---- pass 3: BN2 apply + fc3 (lane-dense padded output) ----------------
    out = pl.pallas_call(
        _out_kernel,
        grid=(nb,),
        in_specs=[tiled(F2), whole(1, F2), whole(1, F2),
                  whole(F2, OUT_PAD), whole(1, OUT_PAD)],
        out_specs=tiled(OUT_PAD),
        out_shape=jax.ShapeDtypeStruct((b_pad, OUT_PAD), jnp.float32),
        compiler_params=cp,
        cost_estimate=pl.CostEstimate(
            flops=2 * b_pad * F2 * OUT_PAD + 2 * b_pad * F2,
            transcendentals=0,
            bytes_accessed=(b_pad * F2 + F2 * OUT_PAD + 2 * F2 + OUT_PAD
                            + b_pad * OUT_PAD) * bs),
    )(h2, sc2, sh2, w3p, b3p)

    return out[:B, :F_OUT]


# ---------------------------------------------------------------------------
# Reference + parameter construction
# ---------------------------------------------------------------------------
def init_params(key):
    """Deterministic synthetic parameters with the module's shapes."""
    ks = jax.random.split(key, 10)

    def lin(kw, kb, fan_in, fan_out):
        # weights stored transposed vs. PyTorch: (in, out)
        w = jax.random.normal(kw, (fan_in, fan_out), jnp.float32) / jnp.sqrt(fan_in)
        b = jax.random.normal(kb, (1, fan_out), jnp.float32) * 0.01
        return w, b

    w1, b1 = lin(ks[0], ks[1], F_IN, F1)
    w2, b2 = lin(ks[2], ks[3], F1, F2)
    w3, b3 = lin(ks[4], ks[5], F2, F_OUT)
    g1 = 1.0 + 0.1 * jax.random.normal(ks[6], (1, F1), jnp.float32)
    be1 = 0.1 * jax.random.normal(ks[7], (1, F1), jnp.float32)
    g2 = 1.0 + 0.1 * jax.random.normal(ks[8], (1, F2), jnp.float32)
    be2 = 0.1 * jax.random.normal(ks[9], (1, F2), jnp.float32)
    return (w1, b1, g1, be1, w2, b2, g2, be2, w3, b3)


def reference_forward(x, params):
    """Pure-JAX reference with PyTorch training-mode BatchNorm semantics."""
    (w1, b1, g1, be1, w2, b2, g2, be2, w3, b3) = params

    def bn(h, g, b):
        mean = jnp.mean(h, axis=0, keepdims=True)
        var = jnp.mean((h - mean) ** 2, axis=0, keepdims=True)   # biased
        return (h - mean) * jax.lax.rsqrt(var + EPS) * g + b

    h = _leaky_relu(x @ w1 + b1)
    h = bn(h, g1, be1)
    h = _leaky_relu(h @ w2 + b2)
    h = bn(h, g2, be2)
    return h @ w3 + b3


if __name__ == "__main__":
    key = jax.random.PRNGKey(0)
    k_x, k_p = jax.random.split(key)

    # Small test: B=20 is deliberately NOT a multiple of the 8-row batch tile,
    # so the padding/masking path and the multi-tile BN reduction are both
    # exercised.  Production would use tile_b=128 (v5e) / 256 (v6e/v7x).
    B = 20
    TILE_B = 8
    x = jax.random.normal(k_x, (B, F_IN), jnp.float32)
    params = init_params(k_p)

    # Exact (f32 MXU) path -- matches the PyTorch training-mode forward.
    out = jax.block_until_ready(
        dynamics_forward(x, params, tile_b=TILE_B, use_bf16_mxu=False))
    ref = reference_forward(x, params)
    assert out.shape == (B, F_OUT), out.shape
    err = float(jnp.max(jnp.abs(out - ref)))
    assert err < 1e-4, f"f32 path max abs err {err}"

    # bf16-MXU fast path (fc2/fc3 operands rounded to bf16; statistics,
    # rsqrt and matmul accumulation stay in f32).
    out_bf16 = jax.block_until_ready(
        dynamics_forward(x, params, tile_b=TILE_B, use_bf16_mxu=True))
    err_bf16 = float(jnp.max(jnp.abs(out_bf16 - ref)))
    assert err_bf16 < 5e-2, f"bf16 path max abs err {err_bf16}"

    print("KERNEL_OK")
</pallas_src>

<mosaic_0001>
module attributes {stable_mosaic.version = 11 : i64} {
  func.func @_mid_kernel(%arg0: i32, %arg1: memref<8x512xf32, #tpu.memory_space<vmem>>, %arg2: memref<8x1xf32, #tpu.memory_space<vmem>>, %arg3: memref<1x512xf32, #tpu.memory_space<vmem>>, %arg4: memref<1x512xf32, #tpu.memory_space<vmem>>, %arg5: memref<512x128xf32, #tpu.memory_space<vmem>>, %arg6: memref<1x128xf32, #tpu.memory_space<vmem>>, %arg7: memref<8x128xf32, #tpu.memory_space<vmem>>, %arg8: memref<1x2x128xf32, #tpu.memory_space<vmem>>) attributes {dimension_semantics = [#tpu.dimension_semantics<parallel>], iteration_bounds = array<i64: 3>, scalar_prefetch = 0 : i64, scratch_operands = 0 : i64, tpu.core_type = #tpu.core_type<tc>, window_params = [{transform_indices = @transform_0, window_bounds = array<i64: 8, 512>}, {transform_indices = @transform_1, window_bounds = array<i64: 8, 1>}, {pipeline_mode = #tpu.pipeline_mode<synchronous>, transform_indices = @transform_2, window_bounds = array<i64: 1, 512>}, {pipeline_mode = #tpu.pipeline_mode<synchronous>, transform_indices = @transform_3, window_bounds = array<i64: 1, 512>}, {pipeline_mode = #tpu.pipeline_mode<synchronous>, transform_indices = @transform_4, window_bounds = array<i64: 512, 128>}, {pipeline_mode = #tpu.pipeline_mode<synchronous>, transform_indices = @transform_5, window_bounds = array<i64: 1, 128>}, {transform_indices = @transform_6, window_bounds = array<i64: 8, 128>}, {transform_indices = @transform_7, window_bounds = array<i64: 1, 2, 128>}]} {
    %c0 = arith.constant 0 : index
    %c0_0 = arith.constant 0 : index
    %0 = vector.load %arg1[%c0, %c0_0] : memref<8x512xf32, #tpu.memory_space<vmem>>, vector<8x512xf32>
    %c0_1 = arith.constant 0 : index
    %c0_2 = arith.constant 0 : index
    %1 = vector.load %arg3[%c0_1, %c0_2] : memref<1x512xf32, #tpu.memory_space<vmem>>, vector<1x512xf32>
    %2 = vector.broadcast %1 : vector<1x512xf32> to vector<8x512xf32>
    %3 = arith.mulf %0, %2 : vector<8x512xf32>
    %c0_3 = arith.constant 0 : index
    %c0_4 = arith.constant 0 : index
    %4 = vector.load %arg4[%c0_3, %c0_4] : memref<1x512xf32, #tpu.memory_space<vmem>>, vector<1x512xf32>
    %5 = vector.broadcast %4 : vector<1x512xf32> to vector<8x512xf32>
    %6 = arith.addf %3, %5 : vector<8x512xf32>
    %c0_5 = arith.constant 0 : index
    %c0_6 = arith.constant 0 : index
    %7 = vector.load %arg5[%c0_5, %c0_6] : memref<512x128xf32, #tpu.memory_space<vmem>>, vector<512x128xf32>
    %cst = arith.constant dense<0.000000e+00> : vector<8x128xf32>
    %8 = tpu.matmul %6, %7, %cst {dimension_numbers = #tpu.dot_dimension_numbers<[1], [0], [0], [1], [0, 0, 1, 1], [], []>} : vector<8x512xf32>, vector<512x128xf32>, vector<8x128xf32> -> vector<8x128xf32>
    %c0_7 = arith.constant 0 : index
    %c0_8 = arith.constant 0 : index
    %9 = vector.load %arg6[%c0_7, %c0_8] : memref<1x128xf32, #tpu.memory_space<vmem>>, vector<1x128xf32>
    %10 = vector.broadcast %9 : vector<1x128xf32> to vector<8x128xf32>
    %11 = arith.addf %8, %10 : vector<8x128xf32>
    %cst_9 = arith.constant 0.000000e+00 : f32
    %12 = vector.broadcast %cst_9 : f32 to vector<8x128xf32>
    %13 = arith.cmpf oge, %11, %12 : vector<8x128xf32>
    %cst_10 = arith.constant 0.00999999977 : f32
    %14 = vector.broadcast %cst_10 : f32 to vector<8x128xf32>
    %15 = arith.mulf %14, %11 : vector<8x128xf32>
    %16 = arith.select %13, %11, %15 : vector<8x128xi1>, vector<8x128xf32>
    %c0_11 = arith.constant 0 : index
    %c0_12 = arith.constant 0 : index
    %17 = vector.load %arg7[%c0_11, %c0_12] : memref<8x128xf32, #tpu.memory_space<vmem>>, vector<8x128xf32>
    tpu.vector_store %arg7[%c0_11, %c0_12], %16 {strides = array<i32>} : memref<8x128xf32, #tpu.memory_space<vmem>>, vector<8x128xf32>,
    %c0_13 = arith.constant 0 : index
    %c0_14 = arith.constant 0 : index
    %18 = vector.load %arg2[%c0_13, %c0_14] : memref<8x1xf32, #tpu.memory_space<vmem>>, vector<8x1xf32>
    %19 = vector.broadcast %18 : vector<8x1xf32> to vector<8x128xf32>
    %20 = arith.mulf %16, %19 : vector<8x128xf32>
    %cst_15 = arith.constant dense<0.000000e+00> : vector<128xf32>
    %21 = vector.multi_reduction <add>, %20, %cst_15 [0] : vector<8x128xf32> to vector<128xf32>
    %22 = vector.shape_cast %21 : vector<128xf32> to vector<1x128xf32>
    %23 = arith.mulf %20, %16 : vector<8x128xf32>
    %cst_16 = arith.constant dense<0.000000e+00> : vector<128xf32>
    %24 = vector.multi_reduction <add>, %23, %cst_16 [0] : vector<8x128xf32> to vector<128xf32>
    %25 = vector.shape_cast %24 : vector<128xf32> to vector<1x128xf32>
    %26 = tpu.concatenate %22, %25 in 0 : vector<1x128xf32>, vector<1x128xf32> -> vector<2x128xf32>
    %27 = vector.shape_cast %26 : vector<2x128xf32> to vector<1x2x128xf32>
    %c0_17 = arith.constant 0 : index
    %c0_18 = arith.constant 0 : index
    %c0_19 = arith.constant 0 : index
    %28 = vector.load %arg8[%c0_17, %c0_18, %c0_19] : memref<1x2x128xf32, #tpu.memory_space<vmem>>, vector<1x2x128xf32>
    tpu.vector_store %arg8[%c0_17, %c0_18, %c0_19], %27 {strides = array<i32>} : memref<1x2x128xf32, #tpu.memory_space<vmem>>, vector<1x2x128xf32>,
    return
  }
  func.func @transform_0(%arg0: i32) -> (i32, i32) {
    %c0_i32 = arith.constant 0 : i32
    %c0_i32_0 = arith.constant 0 : i32
    return %arg0, %c0_i32 : i32, i32
  }
  func.func @transform_1(%arg0: i32) -> (i32, i32) {
    %c0_i32 = arith.constant 0 : i32
    %c0_i32_0 = arith.constant 0 : i32
    return %arg0, %c0_i32 : i32, i32
  }
  func.func @transform_2(%arg0: i32) -> (i32, i32) {
    %c0_i32 = arith.constant 0 : i32
    %c0_i32_0 = arith.constant 0 : i32
    %c0_i32_1 = arith.constant 0 : i32
    return %c0_i32, %c0_i32_0 : i32, i32
  }
  func.func @transform_3(%arg0: i32) -> (i32, i32) {
    %c0_i32 = arith.constant 0 : i32
    %c0_i32_0 = arith.constant 0 : i32
    %c0_i32_1 = arith.constant 0 : i32
    return %c0_i32, %c0_i32_0 : i32, i32
  }
  func.func @transform_4(%arg0: i32) -> (i32, i32) {
    %c0_i32 = arith.constant 0 : i32
    %c0_i32_0 = arith.constant 0 : i32
    %c0_i32_1 = arith.constant 0 : i32
    return %c0_i32, %c0_i32_0 : i32, i32
  }
  func.func @transform_5(%arg0: i32) -> (i32, i32) {
    %c0_i32 = arith.constant 0 : i32
    %c0_i32_0 = arith.constant 0 : i32
    %c0_i32_1 = arith.constant 0 : i32
    return %c0_i32, %c0_i32_0 : i32, i32
  }
  func.func @transform_6(%arg0: i32) -> (i32, i32) {
    %c0_i32 = arith.constant 0 : i32
    %c0_i32_0 = arith.constant 0 : i32
    return %arg0, %c0_i32 : i32, i32
  }
  func.func @transform_7(%arg0: i32) -> (i32, i32, i32) {
    %c0_i32 = arith.constant 0 : i32
    %c0_i32_0 = arith.constant 0 : i32
    %c0_i32_1 = arith.constant 0 : i32
    return %arg0, %c0_i32, %c0_i32_0 : i32, i32, i32
  }
}

module attributes {stable_mosaic.version = 11 : i64} {
  func.func @_fc1_kernel(%arg0: i32, %arg1: memref<8x5xf32, #tpu.memory_space<vmem>>, %arg2: memref<8x1xf32, #tpu.memory_space<vmem>>, %arg3: memref<5x512xf32, #tpu.memory_space<vmem>>, %arg4: memref<1x512xf32, #tpu.memory_space<vmem>>, %arg5: memref<8x512xf32, #tpu.memory_space<vmem>>, %arg6: memref<1x2x512xf32, #tpu.memory_space<vmem>>) attributes {dimension_semantics = [#tpu.dimension_semantics<parallel>], iteration_bounds = array<i64: 3>, scalar_prefetch = 0 : i64, scratch_operands = 0 : i64, tpu.core_type = #tpu.core_type<tc>, window_params = [{transform_indices = @transform_0, window_bounds = array<i64: 8, 5>}, {transform_indices = @transform_1, window_bounds = array<i64: 8, 1>}, {pipeline_mode = #tpu.pipeline_mode<synchronous>, transform_indices = @transform_2, window_bounds = array<i64: 5, 512>}, {pipeline_mode = #tpu.pipeline_mode<synchronous>, transform_indices = @transform_3, window_bounds = array<i64: 1, 512>}, {transform_indices = @transform_4, window_bounds = array<i64: 8, 512>}, {transform_indices = @transform_5, window_bounds = array<i64: 1, 2, 512>}]} {
    %c0 = arith.constant 0 : index
    %c0_0 = arith.constant 0 : index
    %0 = vector.load %arg1[%c0, %c0_0] : memref<8x5xf32, #tpu.memory_space<vmem>>, vector<8x5xf32>
    %c0_1 = arith.constant 0 : index
    %c0_2 = arith.constant 0 : index
    %1 = vector.load %arg3[%c0_1, %c0_2] : memref<5x512xf32, #tpu.memory_space<vmem>>, vector<5x512xf32>
    %cst = arith.constant dense<0.000000e+00> : vector<8x512xf32>
    %2 = tpu.matmul %0, %1, %cst {dimension_numbers = #tpu.dot_dimension_numbers<[1], [0], [0], [1], [0, 0, 1, 1], [], []>} : vector<8x5xf32>, vector<5x512xf32>, vector<8x512xf32> -> vector<8x512xf32>
    %c0_3 = arith.constant 0 : index
    %c0_4 = arith.constant 0 : index
    %3 = vector.load %arg4[%c0_3, %c0_4] : memref<1x512xf32, #tpu.memory_space<vmem>>, vector<1x512xf32>
    %4 = vector.broadcast %3 : vector<1x512xf32> to vector<8x512xf32>
    %5 = arith.addf %2, %4 : vector<8x512xf32>
    %cst_5 = arith.constant 0.000000e+00 : f32
    %6 = vector.broadcast %cst_5 : f32 to vector<8x512xf32>
    %7 = arith.cmpf oge, %5, %6 : vector<8x512xf32>
    %cst_6 = arith.constant 0.00999999977 : f32
    %8 = vector.broadcast %cst_6 : f32 to vector<8x512xf32>
    %9 = arith.mulf %8, %5 : vector<8x512xf32>
    %10 = arith.select %7, %5, %9 : vector<8x512xi1>, vector<8x512xf32>
    %c0_7 = arith.constant 0 : index
    %c0_8 = arith.constant 0 : index
    %11 = vector.load %arg5[%c0_7, %c0_8] : memref<8x512xf32, #tpu.memory_space<vmem>>, vector<8x512xf32>
    tpu.vector_store %arg5[%c0_7, %c0_8], %10 {strides = array<i32>} : memref<8x512xf32, #tpu.memory_space<vmem>>, vector<8x512xf32>,
    %c0_9 = arith.constant 0 : index
    %c0_10 = arith.constant 0 : index
    %12 = vector.load %arg2[%c0_9, %c0_10] : memref<8x1xf32, #tpu.memory_space<vmem>>, vector<8x1xf32>
    %13 = vector.broadcast %12 : vector<8x1xf32> to vector<8x512xf32>
    %14 = arith.mulf %10, %13 : vector<8x512xf32>
    %cst_11 = arith.constant dense<0.000000e+00> : vector<512xf32>
    %15 = vector.multi_reduction <add>, %14, %cst_11 [0] : vector<8x512xf32> to vector<512xf32>
    %16 = vector.shape_cast %15 : vector<512xf32> to vector<1x512xf32>
    %17 = arith.mulf %14, %10 : vector<8x512xf32>
    %cst_12 = arith.constant dense<0.000000e+00> : vector<512xf32>
    %18 = vector.multi_reduction <add>, %17, %cst_12 [0] : vector<8x512xf32> to vector<512xf32>
    %19 = vector.shape_cast %18 : vector<512xf32> to vector<1x512xf32>
    %20 = tpu.concatenate %16, %19 in 0 : vector<1x512xf32>, vector<1x512xf32> -> vector<2x512xf32>
    %21 = vector.shape_cast %20 : vector<2x512xf32> to vector<1x2x512xf32>
    %c0_13 = arith.constant 0 : index
    %c0_14 = arith.constant 0 : index
    %c0_15 = arith.constant 0 : index
    %22 = vector.load %arg6[%c0_13, %c0_14, %c0_15] : memref<1x2x512xf32, #tpu.memory_space<vmem>>, vector<1x2x512xf32>
    tpu.vector_store %arg6[%c0_13, %c0_14, %c0_15], %21 {strides = array<i32>} : memref<1x2x512xf32, #tpu.memory_space<vmem>>, vector<1x2x512xf32>,
    return
  }
  func.func @transform_0(%arg0: i32) -> (i32, i32) {
    %c0_i32 = arith.constant 0 : i32
    %c0_i32_0 = arith.constant 0 : i32
    return %arg0, %c0_i32 : i32, i32
  }
  func.func @transform_1(%arg0: i32) -> (i32, i32) {
    %c0_i32 = arith.constant 0 : i32
    %c0_i32_0 = arith.constant 0 : i32
    return %arg0, %c0_i32 : i32, i32
  }
  func.func @transform_2(%arg0: i32) -> (i32, i32) {
    %c0_i32 = arith.constant 0 : i32
    %c0_i32_0 = arith.constant 0 : i32
    %c0_i32_1 = arith.constant 0 : i32
    return %c0_i32, %c0_i32_0 : i32, i32
  }
  func.func @transform_3(%arg0: i32) -> (i32, i32) {
    %c0_i32 = arith.constant 0 : i32
    %c0_i32_0 = arith.constant 0 : i32
    %c0_i32_1 = arith.constant 0 : i32
    return %c0_i32, %c0_i32_0 : i32, i32
  }
  func.func @transform_4(%arg0: i32) -> (i32, i32) {
    %c0_i32 = arith.constant 0 : i32
    %c0_i32_0 = arith.constant 0 : i32
    return %arg0, %c0_i32 : i32, i32
  }
  func.func @transform_5(%arg0: i32) -> (i32, i32, i32) {
    %c0_i32 = arith.constant 0 : i32
    %c0_i32_0 = arith.constant 0 : i32
    %c0_i32_1 = arith.constant 0 : i32
    return %arg0, %c0_i32, %c0_i32_0 : i32, i32, i32
  }
}

module attributes {stable_mosaic.version = 11 : i64} {
  func.func @_out_kernel(%arg0: i32, %arg1: memref<8x128xf32, #tpu.memory_space<vmem>>, %arg2: memref<1x128xf32, #tpu.memory_space<vmem>>, %arg3: memref<1x128xf32, #tpu.memory_space<vmem>>, %arg4: memref<128x128xf32, #tpu.memory_space<vmem>>, %arg5: memref<1x128xf32, #tpu.memory_space<vmem>>, %arg6: memref<8x128xf32, #tpu.memory_space<vmem>>) attributes {dimension_semantics = [#tpu.dimension_semantics<parallel>], iteration_bounds = array<i64: 3>, scalar_prefetch = 0 : i64, scratch_operands = 0 : i64, tpu.core_type = #tpu.core_type<tc>, window_params = [{transform_indices = @transform_0, window_bounds = array<i64: 8, 128>}, {pipeline_mode = #tpu.pipeline_mode<synchronous>, transform_indices = @transform_1, window_bounds = array<i64: 1, 128>}, {pipeline_mode = #tpu.pipeline_mode<synchronous>, transform_indices = @transform_2, window_bounds = array<i64: 1, 128>}, {pipeline_mode = #tpu.pipeline_mode<synchronous>, transform_indices = @transform_3, window_bounds = array<i64: 128, 128>}, {pipeline_mode = #tpu.pipeline_mode<synchronous>, transform_indices = @transform_4, window_bounds = array<i64: 1, 128>}, {transform_indices = @transform_5, window_bounds = array<i64: 8, 128>}]} {
    %c0 = arith.constant 0 : index
    %c0_0 = arith.constant 0 : index
    %0 = vector.load %arg1[%c0, %c0_0] : memref<8x128xf32, #tpu.memory_space<vmem>>, vector<8x128xf32>
    %c0_1 = arith.constant 0 : index
    %c0_2 = arith.constant 0 : index
    %1 = vector.load %arg2[%c0_1, %c0_2] : memref<1x128xf32, #tpu.memory_space<vmem>>, vector<1x128xf32>
    %2 = vector.broadcast %1 : vector<1x128xf32> to vector<8x128xf32>
    %3 = arith.mulf %0, %2 : vector<8x128xf32>
    %c0_3 = arith.constant 0 : index
    %c0_4 = arith.constant 0 : index
    %4 = vector.load %arg3[%c0_3, %c0_4] : memref<1x128xf32, #tpu.memory_space<vmem>>, vector<1x128xf32>
    %5 = vector.broadcast %4 : vector<1x128xf32> to vector<8x128xf32>
    %6 = arith.addf %3, %5 : vector<8x128xf32>
    %c0_5 = arith.constant 0 : index
    %c0_6 = arith.constant 0 : index
    %7 = vector.load %arg4[%c0_5, %c0_6] : memref<128x128xf32, #tpu.memory_space<vmem>>, vector<128x128xf32>
    %cst = arith.constant dense<0.000000e+00> : vector<8x128xf32>
    %8 = tpu.matmul %6, %7, %cst {dimension_numbers = #tpu.dot_dimension_numbers<[1], [0], [0], [1], [0, 0, 1, 1], [], []>} : vector<8x128xf32>, vector<128x128xf32>, vector<8x128xf32> -> vector<8x128xf32>
    %c0_7 = arith.constant 0 : index
    %c0_8 = arith.constant 0 : index
    %9 = vector.load %arg5[%c0_7, %c0_8] : memref<1x128xf32, #tpu.memory_space<vmem>>, vector<1x128xf32>
    %10 = vector.broadcast %9 : vector<1x128xf32> to vector<8x128xf32>
    %11 = arith.addf %8, %10 : vector<8x128xf32>
    %c0_9 = arith.constant 0 : index
    %c0_10 = arith.constant 0 : index
    %12 = vector.load %arg6[%c0_9, %c0_10] : memref<8x128xf32, #tpu.memory_space<vmem>>, vector<8x128xf32>
    tpu.vector_store %arg6[%c0_9, %c0_10], %11 {strides = array<i32>} : memref<8x128xf32, #tpu.memory_space<vmem>>, vector<8x128xf32>,
    return
  }
  func.func @transform_0(%arg0: i32) -> (i32, i32) {
    %c0_i32 = arith.constant 0 : i32
    %c0_i32_0 = arith.constant 0 : i32
    return %arg0, %c0_i32 : i32, i32
  }
  func.func @transform_1(%arg0: i32) -> (i32, i32) {
    %c0_i32 = arith.constant 0 : i32
    %c0_i32_0 = arith.constant 0 : i32
    %c0_i32_1 = arith.constant 0 : i32
    return %c0_i32, %c0_i32_0 : i32, i32
  }
  func.func @transform_2(%arg0: i32) -> (i32, i32) {
    %c0_i32 = arith.constant 0 : i32
    %c0_i32_0 = arith.constant 0 : i32
    %c0_i32_1 = arith.constant 0 : i32
    return %c0_i32, %c0_i32_0 : i32, i32
  }
  func.func @transform_3(%arg0: i32) -> (i32, i32) {
    %c0_i32 = arith.constant 0 : i32
    %c0_i32_0 = arith.constant 0 : i32
    %c0_i32_1 = arith.constant 0 : i32
    return %c0_i32, %c0_i32_0 : i32, i32
  }
  func.func @transform_4(%arg0: i32) -> (i32, i32) {
    %c0_i32 = arith.constant 0 : i32
    %c0_i32_0 = arith.constant 0 : i32
    %c0_i32_1 = arith.constant 0 : i32
    return %c0_i32, %c0_i32_0 : i32, i32
  }
  func.func @transform_5(%arg0: i32) -> (i32, i32) {
    %c0_i32 = arith.constant 0 : i32
    %c0_i32_0 = arith.constant 0 : i32
    return %arg0, %c0_i32 : i32, i32
  }
}

</mosaic_0001>

<llo_original>
// kernel: dynamics_forward.5
$region0: #{dynamics_forward.5}
  #allocation0 [shape = 'u32[]', space=smem, size = 0x4, offset = 0x4, fixed_abs, tag = 'smem constant byte address 0x4 - core index']
  #allocation1 [shape = 'u32[144,128]{1,0:T(1,128)}', space=vmem, size = 0x12000, scoped, tag = 'internal scratch']
  %s0 = inlined_call_operand.vmem [shape: f32[24,128], index: 0, kind: input, shape index: {}]
  %s1 = inlined_call_operand.vmem [shape: f32[1,128], index: 1, kind: input, shape index: {}]
  %s2 = inlined_call_operand.vmem [shape: f32[1,128], index: 2, kind: input, shape index: {}]
  %s3 = inlined_call_operand.vmem [shape: f32[128,128], index: 3, kind: input, shape index: {}]
  %s4 = inlined_call_operand.vmem [shape: f32[1,128], index: 4, kind: input, shape index: {}]
  %s5 = inlined_call_operand.vmem [shape: f32[24,128], index: 5, kind: output, shape index: {}]
  %s6 = sld [smem:[#allocation0]]
  $region53: #{dynamics_forward.5} parent=0
    _
  %s8 = ssub.s32 1, %s6
  %s9 = scalar_select 0, %s8, %s6
  loop: start=0, step=1, limit=5
  $region2: #{dynamics_forward.5} parent=0 // loop_pre_header
    _
  $region3: #{dynamics_forward.5} parent=0 // loop_header
    %s11 = sphi 0, %s15
    %p12 = scmp.ge.s32.totalorder %s11, 5
    %s21 = sphi 0, %s23
    %s24 = sphi 0, %s21
    %s25 = sphi 0, %s24
    %s41 = sphi 0, %s25
    %s45 = sphi 0, %s45
    %s47 = sphi 0, %s45
    %s48 = sphi 0, %s47
    %s62 = sphi 0, %s48
    %s66 = sphi 0, %s66
    %s68 = sphi 0, %s66
    %s69 = sphi 0, %s68
    %s83 = sphi 0, %s69
    %s87 = sphi 0, %s87
    %s89 = sphi 0, %s87
    %s90 = sphi 0, %s89
    %s104 = sphi 0, %s90
    %s108 = sphi 0, %s108
    %s110 = sphi 0, %s108
    %s111 = sphi 0, %s110
    %s125 = sphi 0, %s111
    %s131 = sphi 0, %s133
    %s134 = sphi 0, %s131
    %s135 = sphi 0, %s134
    %s151 = sphi 0, %s135
  $region4: #{dynamics_forward.5} parent=0 // loop_header_branch
    %14 = sbr.rel (%p12) target = $region8
  $region5: #{dynamics_forward.5} parent=0 // loop_body
    %s16 = ssub.s32 %s11, 1
    %s17 = ssub.s32 %s11, 2
    %s18 = sadd.s32 %s11, 1
    %s19 = ssub.s32 %s11, %s18
    %p20 = scmp.eq.s32.totalorder %s19, 0
    %s22 = sadd.s32 %s21, 1
    %s23 = scalar_select %p20, %s21, %s22
    %p26 = pneg %p20
    %p27 = scmp.eq.s32.totalorder %s11, 2
    %p28 = por %p26, %p27
    %p29 = scmp.ne.s32.totalorder %s21, %s24
    %p30 = scmp.eq.s32.totalorder %s11, 0
    %p31 = por %p29, %p30
    %p32 = scmp.ne.s32.totalorder %s21, %s24
    %p33 = scmp.eq.s32.totalorder %s16, 2
    %p34 = por %p32, %p33
    %p35 = scmp.ne.s32.totalorder %s24, %s25
    %p36 = scmp.eq.s32.totalorder %s16, 0
    %p37 = por %p35, %p36
    %p38 = scmp.ne.s32.totalorder %s24, %s25
    %p39 = scmp.eq.s32.totalorder %s17, 2
    %p40 = por %p38, %p39
    %p42 = scmp.ne.s32.totalorder %s25, %s41
    %p43 = scmp.eq.s32.totalorder %s17, 0
    %p44 = por %p42, %p43
    %s46 = sadd.s32 %s45, 1
    %p49 = scmp.eq.s32.totalorder %s11, 2
    %p50 = scmp.ne.s32.totalorder %s45, %s47
    %p51 = scmp.eq.s32.totalorder %s11, 0
    %p52 = por %p50, %p51
    %p53 = scmp.ne.s32.totalorder %s45, %s47
    %p54 = scmp.eq.s32.totalorder %s16, 2
    %p55 = por %p53, %p54
    %p56 = scmp.ne.s32.totalorder %s47, %s48
    %p57 = scmp.eq.s32.totalorder %s16, 0
    %p58 = por %p56, %p57
    %p59 = scmp.ne.s32.totalorder %s47, %s48
    %p60 = scmp.eq.s32.totalorder %s17, 2
    %p61 = por %p59, %p60
    %p63 = scmp.ne.s32.totalorder %s48, %s62
    %p64 = scmp.eq.s32.totalorder %s17, 0
    %p65 = por %p63, %p64
    %s67 = sadd.s32 %s66, 1
    %p70 = scmp.eq.s32.totalorder %s11, 2
    %p71 = scmp.ne.s32.totalorder %s66, %s68
    %p72 = scmp.eq.s32.totalorder %s11, 0
    %p73 = por %p71, %p72
    %p74 = scmp.ne.s32.totalorder %s66, %s68
    %p75 = scmp.eq.s32.totalorder %s16, 2
    %p76 = por %p74, %p75
    %p77 = scmp.ne.s32.totalorder %s68, %s69
    %p78 = scmp.eq.s32.totalorder %s16, 0
    %p79 = por %p77, %p78
    %p80 = scmp.ne.s32.totalorder %s68, %s69
    %p81 = scmp.eq.s32.totalorder %s17, 2
    %p82 = por %p80, %p81
    %p84 = scmp.ne.s32.totalorder %s69, %s83
    %p85 = scmp.eq.s32.totalorder %s17, 0
    %p86 = por %p84, %p85
    %s88 = sadd.s32 %s87, 1
    %p91 = scmp.eq.s32.totalorder %s11, 2
    %p92 = scmp.ne.s32.totalorder %s87, %s89
    %p93 = scmp.eq.s32.totalorder %s11, 0
    %p94 = por %p92, %p93
    %p95 = scmp.ne.s32.totalorder %s87, %s89
    %p96 = scmp.eq.s32.totalorder %s16, 2
    %p97 = por %p95, %p96
    %p98 = scmp.ne.s32.totalorder %s89, %s90
    %p99 = scmp.eq.s32.totalorder %s16, 0
    %p100 = por %p98, %p99
    %p101 = scmp.ne.s32.totalorder %s89, %s90
    %p102 = scmp.eq.s32.totalorder %s17, 2
    %p103 = por %p101, %p102
    %p105 = scmp.ne.s32.totalorder %s90, %s104
    %p106 = scmp.eq.s32.totalorder %s17, 0
    %p107 = por %p105, %p106
    %s109 = sadd.s32 %s108, 1
    %p112 = scmp.eq.s32.totalorder %s11, 2
    %p113 = scmp.ne.s32.totalorder %s108, %s110
    %p114 = scmp.eq.s32.totalorder %s11, 0
    %p115 = por %p113, %p114
    %p116 = scmp.ne.s32.totalorder %s108, %s110
    %p117 = scmp.eq.s32.totalorder %s16, 2
    %p118 = por %p116, %p117
    %p119 = scmp.ne.s32.totalorder %s110, %s111
    %p120 = scmp.eq.s32.totalorder %s16, 0
    %p121 = por %p119, %p120
    %p122 = scmp.ne.s32.totalorder %s110, %s111
    %p123 = scmp.eq.s32.totalorder %s17, 2
    %p124 = por %p122, %p123
    %p126 = scmp.ne.s32.totalorder %s111, %s125
    %p127 = scmp.eq.s32.totalorder %s17, 0
    %p128 = por %p126, %p127
    %s129 = ssub.s32 %s11, %s18
    %p130 = scmp.eq.s32.totalorder %s129, 0
    %s132 = sadd.s32 %s131, 1
    %s133 = scalar_select %p130, %s131, %s132
    %p136 = pneg %p130
    %p137 = scmp.eq.s32.totalorder %s11, 2
    %p138 = por %p136, %p137
    %p139 = scmp.ne.s32.totalorder %s131, %s134
    %p140 = scmp.eq.s32.totalorder %s11, 0
    %p141 = por %p139, %p140
    %p142 = scmp.ne.s32.totalorder %s131, %s134
    %p143 = scmp.eq.s32.totalorder %s16, 2
    %p144 = por %p142, %p143
    %p145 = scmp.ne.s32.totalorder %s134, %s135
    %p146 = scmp.eq.s32.totalorder %s16, 0
    %p147 = por %p145, %p146
    %p148 = scmp.ne.s32.totalorder %s134, %s135
    %p149 = scmp.eq.s32.totalorder %s17, 2
    %p150 = por %p148, %p149
    %p152 = scmp.ne.s32.totalorder %s135, %s151
    %p153 = scmp.eq.s32.totalorder %s17, 0
    %p154 = por %p152, %p153
    %p155 = scmp.le.s32.totalorder 1, %s11
    %p156 = scmp.lt.s32.totalorder %s11, 4
    %p157 = pnand %p155, %p156
    %p158 = pneg %p157
    // Predicated region
    $region9: #{dynamics_forward.5} parent=5 // pred_check
      _
    $region10: #{dynamics_forward.5} parent=5 // pred_check_branch
      %160 = sbr.rel (%p157) target = $region12
    $region11: #{dynamics_forward.5} parent=5 // pred_region
      %s161 = ssub.s32 %s11, 1
      // Predicated region
      $region13: #{dynamics_forward.5} parent=11 // pred_check
        %p162 = pneg %p58
      $region14: #{dynamics_forward.5} parent=11 // pred_check_branch
        %164 = sbr.rel (%p162) target = $region16
      $region15: #{dynamics_forward.5} parent=11 // pred_region
        _
      $region16: #{dynamics_forward.5} parent=11 // pred_fallthru
        _
      // Predicated region
      $region17: #{dynamics_forward.5} parent=11 // pred_check
        %p165 = pneg %p79
      $region18: #{dynamics_forward.5} parent=11 // pred_check_branch
        %167 = sbr.rel (%p165) target = $region20
      $region19: #{dynamics_forward.5} parent=11 // pred_region
        _
      $region20: #{dynamics_forward.5} parent=11 // pred_fallthru
        _
      // Predicated region
      $region21: #{dynamics_forward.5} parent=11 // pred_check
        %p168 = pneg %p100
      $region22: #{dynamics_forward.5} parent=11 // pred_check_branch
        %170 = sbr.rel (%p168) target = $region24
      $region23: #{dynamics_forward.5} parent=11 // pred_region
        _
      $region24: #{dynamics_forward.5} parent=11 // pred_fallthru
        _
      // Predicated region
      $region25: #{dynamics_forward.5} parent=11 // pred_check
        %p171 = pneg %p121
      $region26: #{dynamics_forward.5} parent=11 // pred_check_branch
        %173 = sbr.rel (%p171) target = $region28
      $region27: #{dynamics_forward.5} parent=11 // pred_region
        _
      $region28: #{dynamics_forward.5} parent=11 // pred_fallthru
        _
    $region12: #{dynamics_forward.5} parent=5 // pred_fallthru
      _
    %p174 = scmp.lt.s32.totalorder %s11, 3
    // Predicated region
    $region29: #{dynamics_forward.5} parent=5 // pred_check
      %p175 = pneg %p174
    $region30: #{dynamics_forward.5} parent=5 // pred_check_branch
      %177 = sbr.rel (%p175) target = $region32
    $region31: #{dynamics_forward.5} parent=5 // pred_region
      // Predicated region
      $region33: #{dynamics_forward.5} parent=31 // pred_check
        %p178 = pneg %p31
      $region34: #{dynamics_forward.5} parent=31 // pred_check_branch
        %180 = sbr.rel (%p178) target = $region36
      $region35: #{dynamics_forward.5} parent=31 // pred_region
        %p181 = scmp.lt.s32.totalorder %s11, 2
        %s182 = scalar_select %p181, %s11, 2
        %s183 = smul.addr %s182, 8
        %s184 = scalar_lea.vmem %s0, %s183
      $region36: #{dynamics_forward.5} parent=31 // pred_fallthru
        _
    $region32: #{dynamics_forward.5} parent=5 // pred_fallthru
      _
    %p185 = scmp.le.s32.totalorder 1, %s11
    %p186 = scmp.lt.s32.totalorder %s11, 4
    %p187 = pnand %p185, %p186
    %p188 = pneg %p187
    // Predicated region
    $region37: #{dynamics_forward.5} parent=5 // pred_check
      _
    $region38: #{dynamics_forward.5} parent=5 // pred_check_branch
      %190 = sbr.rel (%p187) target = $region40
    $region39: #{dynamics_forward.5} parent=5 // pred_region
      %s191 = ssub.s32 %s11, 1
      %p192 = scmp.lt.s32.totalorder %s16, 2
      %s193 = scalar_select %p192, %s16, 2
      %s194 = smul.addr %s193, 8
      %s195 = scalar_lea.vmem %s0, %s194
      %p196 = pneg %p37
      %p197 = pneg %p34
      %p198 = pneg %p58
      %p199 = pneg %p55
      %p200 = pneg %p79
      %p201 = pneg %p76
      %p202 = pneg %p100
      %p203 = pneg %p97
      %p204 = pneg %p121
      %p205 = pneg %p118
      %p206 = pneg %p147
      %p207 = pneg %p144
      %p208 = scmp.lt.s32.totalorder %s16, 2
      %s209 = scalar_select %p208, %s16, 2
      %s210 = smul.addr %s209, 8
      %s211 = scalar_lea.vmem %s5, %s210
      %p212 = scmp.lt.s32.totalorder %s16, 2
      %s213 = scalar_select %p212, %s16, 2
      %s214 = smul.addr %s213, 8
      %s215 = scalar_lea.vmem %s0, %s214
      %p216 = scmp.lt.s32.totalorder %s16, 2
      %s217 = scalar_select %p216, %s16, 2
      %s218 = smul.addr %s217, 8
      %s219 = scalar_lea.vmem %s5, %s218
      %v220 = vld [vmem:[%s215] sm:$0xff]
      %v221 = vld [vmem:[%s1] sm:$0x1]
      %v223 = vlaneseq
      %v224 = vshrl.u32 %v223, 7
      %v225 = vsub.s32 0, %v224
      %v226 = vrot.slane %v221, %v225
      %v228 = vmul.f32 %v220, %v226
      %v229 = vld [vmem:[%s2] sm:$0x1]
      %v231 = vlaneseq
      %v232 = vshrl.u32 %v231, 7
      %v233 = vsub.s32 0, %v232
      %v234 = vrot.slane %v229, %v233
      %v236 = vadd.f32 %v228, %v234
      %v237 = vld [vmem:[%s3] sm:$0xff]
      %v238 = vld [vmem:[%s3 + $0x8] sm:$0xff]
      %v239 = vld [vmem:[%s3 + $0x10] sm:$0xff]
      %v240 = vld [vmem:[%s3 + $0x18] sm:$0xff]
      %v241 = vld [vmem:[%s3 + $0x20] sm:$0xff]
      %v242 = vld [vmem:[%s3 + $0x28] sm:$0xff]
      %v243 = vld [vmem:[%s3 + $0x30] sm:$0xff]
      %v244 = vld [vmem:[%s3 + $0x38] sm:$0xff]
      %v245 = vld [vmem:[%s3 + $0x40] sm:$0xff]
      %v246 = vld [vmem:[%s3 + $0x48] sm:$0xff]
      %v247 = vld [vmem:[%s3 + $0x50] sm:$0xff]
      %v248 = vld [vmem:[%s3 + $0x58] sm:$0xff]
      %v249 = vld [vmem:[%s3 + $0x60] sm:$0xff]
      %v250 = vld [vmem:[%s3 + $0x68] sm:$0xff]
      %v251 = vld [vmem:[%s3 + $0x70] sm:$0xff]
      %v252 = vld [vmem:[%s3 + $0x78] sm:$0xff]
      %v253 = vld [vmem:[%s4] sm:$0x1]
      %v255 = vlaneseq
      %v256 = vshrl.u32 %v255, 7
      %v257 = vsub.s32 0, %v256
      %v258 = vrot.slane %v253, %v257
      %260 = vmatprep.subr.mxu0 0.0
      %261 = vmatpush1.msra.mxu0 %v252
      %262 = vmatprep.subr.mxu0 0.0
      %263 = vmatpush1.msra.mxu0 %v251
      %264 = vmatprep.subr.mxu0 0.0
      %265 = vmatpush1.msra.mxu0 %v250
      %266 = vmatprep.subr.mxu0 0.0
      %267 = vmatpush1.msra.mxu0 %v249
      %268 = vmatprep.subr.mxu0 0.0
      %269 = vmatpush1.msra.mxu0 %v248
      %270 = vmatprep.subr.mxu0 0.0
      %271 = vmatpush1.msra.mxu0 %v247
      %272 = vmatprep.subr.mxu0 0.0
      %273 = vmatpush1.msra.mxu0 %v246
      %274 = vmatprep.subr.mxu0 0.0
      %275 = vmatpush1.msra.mxu0 %v245
      %276 = vmatprep.subr.mxu0 0.0
      %277 = vmatpush1.msra.mxu0 %v244
      %278 = vmatprep.subr.mxu0 0.0
      %279 = vmatpush1.msra.mxu0 %v243
      %280 = vmatprep.subr.mxu0 0.0
      %281 = vmatpush1.msra.mxu0 %v242
      %282 = vmatprep.subr.mxu0 0.0
      %283 = vmatpush1.msra.mxu0 %v241
      %284 = vmatprep.subr.mxu0 0.0
      %285 = vmatpush1.msra.mxu0 %v240
      %286 = vmatprep.subr.mxu0 0.0
      %287 = vmatpush1.msra.mxu0 %v239
      %288 = vmatprep.subr.mxu0 0.0
      %289 = vmatpush1.msra.mxu0 %v238
      %290 = vmatprep.subr.mxu0 0.0
      %291 = vmatpush1.msra.mxu0 %v237
      %292 = vmatprep.subr.mxu0 0.0
      %293 = vmatpush2.msra.mxu0 0.0
      %294 = vmatprep.subr.mxu0 0.0
      %295 = vmatpush2.msra.mxu0 0.0
      %296 = vmatprep.subr.mxu0 0.0
      %297 = vmatpush2.msra.mxu0 0.0
      %298 = vmatprep.subr.mxu0 0.0
      %299 = vmatpush2.msra.mxu0 0.0
      %300 = vmatprep.subr.mxu0 0.0
      %301 = vmatpush2.msra.mxu0 0.0
      %302 = vmatprep.subr.mxu0 0.0
      %303 = vmatpush2.msra.mxu0 0.0
      %304 = vmatprep.subr.mxu0 0.0
      %305 = vmatpush2.msra.mxu0 0.0
      %306 = vmatprep.subr.mxu0 0.0
      %307 = vmatpush2.msra.mxu0 0.0
      %308 = vmatprep.subr.mxu0 0.0
      %309 = vmatpush2.msra.mxu0 0.0
      %310 = vmatprep.subr.mxu0 0.0
      %311 = vmatpush2.msra.mxu0 0.0
      %312 = vmatprep.subr.mxu0 0.0
      %313 = vmatpush2.msra.mxu0 0.0
      %314 = vmatprep.subr.mxu0 0.0
      %315 = vmatpush2.msra.mxu0 0.0
      %316 = vmatprep.subr.mxu0 0.0
      %317 = vmatpush2.msra.mxu0 0.0
      %318 = vmatprep.subr.mxu0 0.0
      %319 = vmatpush2.msra.mxu0 0.0
      %320 = vmatprep.subr.mxu0 0.0
      %321 = vmatpush2.msra.mxu0 0.0
      %322 = vmatprep.subr.mxu0 0.0
      %323 = vmatpush2.msra.mxu0 0.0
      %324 = vmatprep.mubr.f32.mxu0 0.0
      %325 = vmatmul.mubr.f32.gmra.mxu0 %v236
      %v326 = vpop.f32.mrf.mxu0
      %v327 = vadd.f32 %v258, %v326
      %v328 = vpop.f32.mrf.mxu0
      %329 = vdwg.mxu0
      %330 = vst [vmem:[%s219] sm:$0xff] %v327
      %p331 = scmp.lt.s32.totalorder %s16, 2
      %s332 = scalar_select %p331, %s16, 2
      %s333 = smul.addr %s332, 8
      %s334 = scalar_lea.vmem %s5, %s333
      // Predicated region
      $region41: #{dynamics_forward.5} parent=39 // pred_check
        %p335 = pneg %p144
      $region42: #{dynamics_forward.5} parent=39 // pred_check_branch
        %337 = sbr.rel (%p335) target = $region44
      $region43: #{dynamics_forward.5} parent=39 // pred_region
        _
      $region44: #{dynamics_forward.5} parent=39 // pred_fallthru
        _
    $region40: #{dynamics_forward.5} parent=5 // pred_fallthru
      _
    %p338 = scmp.le.s32.totalorder 2, %s11
    // Predicated region
    $region45: #{dynamics_forward.5} parent=5 // pred_check
      %p339 = pneg %p338
    $region46: #{dynamics_forward.5} parent=5 // pred_check_branch
      %341 = sbr.rel (%p339) target = $region48
    $region47: #{dynamics_forward.5} parent=5 // pred_region
      %s342 = ssub.s32 %s11, 2
      // Predicated region
      $region49: #{dynamics_forward.5} parent=47 // pred_check
        %p343 = pneg %p150
      $region50: #{dynamics_forward.5} parent=47 // pred_check_branch
        %345 = sbr.rel (%p343) target = $region52
      $region51: #{dynamics_forward.5} parent=47 // pred_region
        %p346 = scmp.lt.s32.totalorder %s17, 2
        %s347 = scalar_select %p346, %s17, 2
        %s348 = smul.addr %s347, 8
        %s349 = scalar_lea.vmem %s5, %s348
      $region52: #{dynamics_forward.5} parent=47 // pred_fallthru
        _
    $region48: #{dynamics_forward.5} parent=5 // pred_fallthru
      _
  $region6: #{dynamics_forward.5} parent=0 // loop_footer
    %s15 = sadd.s32 1, %s11
  $region7: #{dynamics_forward.5} parent=0 // loop_footer_branch
    %10 = sbr.rel target = $region3
  $region8: #{dynamics_forward.5} parent=0 // loop_exit
    _

// kernel: dynamics_forward.4
$region0: #{dynamics_forward.4}
  #allocation0 [shape = 'u32[]', space=smem, size = 0x4, offset = 0x4, fixed_abs, tag = 'smem constant byte address 0x4 - core index']
  #allocation1 [shape = 'u32[144,128]{1,0:T(1,128)}', space=vmem, size = 0x12000, scoped, tag = 'internal scratch']
  %s0 = inlined_call_operand.vmem [shape: f32[24,512], index: 0, kind: input, shape index: {}]
  %s1 = inlined_call_operand.vmem [shape: f32[24,1], index: 1, kind: input, shape index: {}]
  %s2 = inlined_call_operand.vmem [shape: f32[1,512], index: 2, kind: input, shape index: {}]
  %s3 = inlined_call_operand.vmem [shape: f32[1,512], index: 3, kind: input, shape index: {}]
  %s4 = inlined_call_operand.hbm [shape: f32[512,128], index: 4, kind: input, shape index: {}]
  %s5 = inlined_call_operand.vmem [shape: f32[1,128], index: 5, kind: input, shape index: {}]
  %s6 = inlined_call_operand.vmem [shape: f32[24,128], index: 6, kind: output, shape index: {0}]
  %s7 = inlined_call_operand.vmem [shape: f32[3,2,128], index: 7, kind: output, shape index: {1}]
  %8 = xla_tuple %s6, %s7
  %s9 = sld [smem:[#allocation0]]
  $region69: #{dynamics_forward.4} parent=0
    _
  %s11 = ssub.s32 1, %s9
  %s12 = scalar_select 0, %s11, %s9
  $region1: #{dynamics_forward.4} parent=0
    #allocation2 [shape = 'u8[262144]{0}', space=vmem, size = 0x40000, scoped, tag = 'input window, operand 4, single buffered']
    #allocation3 [shape = 's32[2]{0}', space=sflag, size = 0x8, scoped, tag = 'scoped memory for dynamics_forward.4']
    %13 = vsyncpa [#allocation3], 0
    loop: start=0, step=1, limit=5
    $region2: #{dynamics_forward.4} parent=1 // loop_pre_header
      _
    $region3: #{dynamics_forward.4} parent=1 // loop_header
      %s15 = sphi 0, %s19
      %p16 = scmp.ge.s32.totalorder %s15, 5
      %s25 = sphi 0, %s27
      %s28 = sphi 0, %s25
      %s29 = sphi 0, %s28
      %s45 = sphi 0, %s29
      %s51 = sphi 0, %s53
      %s54 = sphi 0, %s51
      %s55 = sphi 0, %s54
      %s71 = sphi 0, %s55
      %s75 = sphi 0, %s75
      %s77 = sphi 0, %s75
      %s78 = sphi 0, %s77
      %s92 = sphi 0, %s78
      %s96 = sphi 0, %s96
      %s98 = sphi 0, %s96
      %s99 = sphi 0, %s98
      %s113 = sphi 0, %s99
      %s117 = sphi 0, %s117
      %s119 = sphi 0, %s117
      %s120 = sphi 0, %s119
      %s134 = sphi 0, %s120
      %s138 = sphi 0, %s138
      %s140 = sphi 0, %s138
      %s141 = sphi 0, %s140
      %s155 = sphi 0, %s141
      %s161 = sphi 0, %s163
      %s164 = sphi 0, %s161
      %s165 = sphi 0, %s164
      %s181 = sphi 0, %s165
      %s187 = sphi 0, %s189
      %s190 = sphi 0, %s187
      %s191 = sphi 0, %s190
      %s207 = sphi 0, %s191
    $region4: #{dynamics_forward.4} parent=1 // loop_header_branch
      %18 = sbr.rel (%p16) target = $region8
    $region5: #{dynamics_forward.4} parent=1 // loop_body
      %s20 = ssub.s32 %s15, 1
      %s21 = ssub.s32 %s15, 2
      %s22 = sadd.s32 %s15, 1
      %s23 = ssub.s32 %s15, %s22
      %p24 = scmp.eq.s32.totalorder %s23, 0
      %s26 = sadd.s32 %s25, 1
      %s27 = scalar_select %p24, %s25, %s26
      %p30 = pneg %p24
      %p31 = scmp.eq.s32.totalorder %s15, 2
      %p32 = por %p30, %p31
      %p33 = scmp.ne.s32.totalorder %s25, %s28
      %p34 = scmp.eq.s32.totalorder %s15, 0
      %p35 = por %p33, %p34
      %p36 = scmp.ne.s32.totalorder %s25, %s28
      %p37 = scmp.eq.s32.totalorder %s20, 2
      %p38 = por %p36, %p37
      %p39 = scmp.ne.s32.totalorder %s28, %s29
      %p40 = scmp.eq.s32.totalorder %s20, 0
      %p41 = por %p39, %p40
      %p42 = scmp.ne.s32.totalorder %s28, %s29
      %p43 = scmp.eq.s32.totalorder %s21, 2
      %p44 = por %p42, %p43
      %p46 = scmp.ne.s32.totalorder %s29, %s45
      %p47 = scmp.eq.s32.totalorder %s21, 0
      %p48 = por %p46, %p47
      %s49 = ssub.s32 %s15, %s22
      %p50 = scmp.eq.s32.totalorder %s49, 0
      %s52 = sadd.s32 %s51, 1
      %s53 = scalar_select %p50, %s51, %s52
      %p56 = pneg %p50
      %p57 = scmp.eq.s32.totalorder %s15, 2
      %p58 = por %p56, %p57
      %p59 = scmp.ne.s32.totalorder %s51, %s54
      %p60 = scmp.eq.s32.totalorder %s15, 0
      %p61 = por %p59, %p60
      %p62 = scmp.ne.s32.totalorder %s51, %s54
      %p63 = scmp.eq.s32.totalorder %s20, 2
      %p64 = por %p62, %p63
      %p65 = scmp.ne.s32.totalorder %s54, %s55
      %p66 = scmp.eq.s32.totalorder %s20, 0
      %p67 = por %p65, %p66
      %p68 = scmp.ne.s32.totalorder %s54, %s55
      %p69 = scmp.eq.s32.totalorder %s21, 2
      %p70 = por %p68, %p69
      %p72 = scmp.ne.s32.totalorder %s55, %s71
      %p73 = scmp.eq.s32.totalorder %s21, 0
      %p74 = por %p72, %p73
      %s76 = sadd.s32 %s75, 1
      %p79 = scmp.eq.s32.totalorder %s15, 2
      %p80 = scmp.ne.s32.totalorder %s75, %s77
      %p81 = scmp.eq.s32.totalorder %s15, 0
      %p82 = por %p80, %p81
      %p83 = scmp.ne.s32.totalorder %s75, %s77
      %p84 = scmp.eq.s32.totalorder %s20, 2
      %p85 = por %p83, %p84
      %p86 = scmp.ne.s32.totalorder %s77, %s78
      %p87 = scmp.eq.s32.totalorder %s20, 0
      %p88 = por %p86, %p87
      %p89 = scmp.ne.s32.totalorder %s77, %s78
      %p90 = scmp.eq.s32.totalorder %s21, 2
      %p91 = por %p89, %p90
      %p93 = scmp.ne.s32.totalorder %s78, %s92
      %p94 = scmp.eq.s32.totalorder %s21, 0
      %p95 = por %p93, %p94
      %s97 = sadd.s32 %s96, 1
      %p100 = scmp.eq.s32.totalorder %s15, 2
      %p101 = scmp.ne.s32.totalorder %s96, %s98
      %p102 = scmp.eq.s32.totalorder %s15, 0
      %p103 = por %p101, %p102
      %p104 = scmp.ne.s32.totalorder %s96, %s98
      %p105 = scmp.eq.s32.totalorder %s20, 2
      %p106 = por %p104, %p105
      %p107 = scmp.ne.s32.totalorder %s98, %s99
      %p108 = scmp.eq.s32.totalorder %s20, 0
      %p109 = por %p107, %p108
      %p110 = scmp.ne.s32.totalorder %s98, %s99
      %p111 = scmp.eq.s32.totalorder %s21, 2
      %p112 = por %p110, %p111
      %p114 = scmp.ne.s32.totalorder %s99, %s113
      %p115 = scmp.eq.s32.totalorder %s21, 0
      %p116 = por %p114, %p115
      %s118 = sadd.s32 %s117, 1
      %p121 = scmp.eq.s32.totalorder %s15, 2
      %p122 = scmp.ne.s32.totalorder %s117, %s119
      %p123 = scmp.eq.s32.totalorder %s15, 0
      %p124 = por %p122, %p123
      %p125 = scmp.ne.s32.totalorder %s117, %s119
      %p126 = scmp.eq.s32.totalorder %s20, 2
      %p127 = por %p125, %p126
      %p128 = scmp.ne.s32.totalorder %s119, %s120
      %p129 = scmp.eq.s32.totalorder %s20, 0
      %p130 = por %p128, %p129
      %p131 = scmp.ne.s32.totalorder %s119, %s120
      %p132 = scmp.eq.s32.totalorder %s21, 2
      %p133 = por %p131, %p132
      %p135 = scmp.ne.s32.totalorder %s120, %s134
      %p136 = scmp.eq.s32.totalorder %s21, 0
      %p137 = por %p135, %p136
      %s139 = sadd.s32 %s138, 1
      %p142 = scmp.eq.s32.totalorder %s15, 2
      %p143 = scmp.ne.s32.totalorder %s138, %s140
      %p144 = scmp.eq.s32.totalorder %s15, 0
      %p145 = por %p143, %p144
      %p146 = scmp.ne.s32.totalorder %s138, %s140
      %p147 = scmp.eq.s32.totalorder %s20, 2
      %p148 = por %p146, %p147
      %p149 = scmp.ne.s32.totalorder %s140, %s141
      %p150 = scmp.eq.s32.totalorder %s20, 0
      %p151 = por %p149, %p150
      %p152 = scmp.ne.s32.totalorder %s140, %s141
      %p153 = scmp.eq.s32.totalorder %s21, 2
      %p154 = por %p152, %p153
      %p156 = scmp.ne.s32.totalorder %s141, %s155
      %p157 = scmp.eq.s32.totalorder %s21, 0
      %p158 = por %p156, %p157
      %s159 = ssub.s32 %s15, %s22
      %p160 = scmp.eq.s32.totalorder %s159, 0
      %s162 = sadd.s32 %s161, 1
      %s163 = scalar_select %p160, %s161, %s162
      %p166 = pneg %p160
      %p167 = scmp.eq.s32.totalorder %s15, 2
      %p168 = por %p166, %p167
      %p169 = scmp.ne.s32.totalorder %s161, %s164
      %p170 = scmp.eq.s32.totalorder %s15, 0
      %p171 = por %p169, %p170
      %p172 = scmp.ne.s32.totalorder %s161, %s164
      %p173 = scmp.eq.s32.totalorder %s20, 2
      %p174 = por %p172, %p173
      %p175 = scmp.ne.s32.totalorder %s164, %s165
      %p176 = scmp.eq.s32.totalorder %s20, 0
      %p177 = por %p175, %p176
      %p178 = scmp.ne.s32.totalorder %s164, %s165
      %p179 = scmp.eq.s32.totalorder %s21, 2
      %p180 = por %p178, %p179
      %p182 = scmp.ne.s32.totalorder %s165, %s181
      %p183 = scmp.eq.s32.totalorder %s21, 0
      %p184 = por %p182, %p183
      %s185 = ssub.s32 %s15, %s22
      %p186 = scmp.eq.s32.totalorder %s185, 0
      %s188 = sadd.s32 %s187, 1
      %s189 = scalar_select %p186, %s187, %s188
      %p192 = pneg %p186
      %p193 = scmp.eq.s32.totalorder %s15, 2
      %p194 = por %p192, %p193
      %p195 = scmp.ne.s32.totalorder %s187, %s190
      %p196 = scmp.eq.s32.totalorder %s15, 0
      %p197 = por %p195, %p196
      %p198 = scmp.ne.s32.totalorder %s187, %s190
      %p199 = scmp.eq.s32.totalorder %s20, 2
      %p200 = por %p198, %p199
      %p201 = scmp.ne.s32.totalorder %s190, %s191
      %p202 = scmp.eq.s32.totalorder %s20, 0
      %p203 = por %p201, %p202
      %p204 = scmp.ne.s32.totalorder %s190, %s191
      %p205 = scmp.eq.s32.totalorder %s21, 2
      %p206 = por %p204, %p205
      %p208 = scmp.ne.s32.totalorder %s191, %s207
      %p209 = scmp.eq.s32.totalorder %s21, 0
      %p210 = por %p208, %p209
      %p211 = scmp.le.s32.totalorder 1, %s15
      %p212 = scmp.lt.s32.totalorder %s15, 4
      %p213 = pnand %p211, %p212
      %p214 = pneg %p213
      // Predicated region
      $region9: #{dynamics_forward.4} parent=5 // pred_check
        _
      $region10: #{dynamics_forward.4} parent=5 // pred_check_branch
        %216 = sbr.rel (%p213) target = $region12
      $region11: #{dynamics_forward.4} parent=5 // pred_region
        %s217 = ssub.s32 %s15, 1
        // Predicated region
        $region13: #{dynamics_forward.4} parent=11 // pred_check
          %p218 = pneg %p88
        $region14: #{dynamics_forward.4} parent=11 // pred_check_branch
          %220 = sbr.rel (%p218) target = $region16
        $region15: #{dynamics_forward.4} parent=11 // pred_region
          _
        $region16: #{dynamics_forward.4} parent=11 // pred_fallthru
          _
        // Predicated region
        $region17: #{dynamics_forward.4} parent=11 // pred_check
          %p221 = pneg %p109
        $region18: #{dynamics_forward.4} parent=11 // pred_check_branch
          %223 = sbr.rel (%p221) target = $region20
        $region19: #{dynamics_forward.4} parent=11 // pred_region
          _
        $region20: #{dynamics_forward.4} parent=11 // pred_fallthru
          _
        // Predicated region
        $region21: #{dynamics_forward.4} parent=11 // pred_check
          %p224 = pneg %p130
        $region22: #{dynamics_forward.4} parent=11 // pred_check_branch
          %226 = sbr.rel (%p224) target = $region24
        $region23: #{dynamics_forward.4} parent=11 // pred_region
          %s228 = ssub.s32 8192, 8192
          %229 = vsyncadd [#allocation3], %s228
          %s230 = sshll.u32 [#allocation2], 4
          %s231 = int_to_ptr.vmem [resolvable:$true] %s230
          %236 = dma.hbm_to_vmem [thread:$0]  %s4, 8192, %s231, [#allocation3], 128, 128, 8
        $region24: #{dynamics_forward.4} parent=11 // pred_fallthru
          _
        // Predicated region
        $region25: #{dynamics_forward.4} parent=11 // pred_check
          %p237 = pneg %p151
        $region26: #{dynamics_forward.4} parent=11 // pred_check_branch
          %239 = sbr.rel (%p237) target = $region28
        $region27: #{dynamics_forward.4} parent=11 // pred_region
          _
        $region28: #{dynamics_forward.4} parent=11 // pred_fallthru
          _
      $region12: #{dynamics_forward.4} parent=5 // pred_fallthru
        _
      %p240 = scmp.lt.s32.totalorder %s15, 3
      // Predicated region
      $region29: #{dynamics_forward.4} parent=5 // pred_check
        %p241 = pneg %p240
      $region30: #{dynamics_forward.4} parent=5 // pred_check_branch
        %243 = sbr.rel (%p241) target = $region32
      $region31: #{dynamics_forward.4} parent=5 // pred_region
        // Predicated region
        $region33: #{dynamics_forward.4} parent=31 // pred_check
          %p244 = pneg %p35
        $region34: #{dynamics_forward.4} parent=31 // pred_check_branch
          %246 = sbr.rel (%p244) target = $region36
        $region35: #{dynamics_forward.4} parent=31 // pred_region
          %p247 = scmp.lt.s32.totalorder %s15, 2
          %s248 = scalar_select %p247, %s15, 2
          %s249 = smul.addr %s248, 4
          %s250 = smul.addr %s249, 8
          %s251 = scalar_lea.vmem %s0, %s250
        $region36: #{dynamics_forward.4} parent=31 // pred_fallthru
          _
        // Predicated region
        $region37: #{dynamics_forward.4} parent=31 // pred_check
          %p252 = pneg %p61
        $region38: #{dynamics_forward.4} parent=31 // pred_check_branch
          %254 = sbr.rel (%p252) target = $region40
        $region39: #{dynamics_forward.4} parent=31 // pred_region
          %p255 = scmp.lt.s32.totalorder %s15, 2
          %s256 = scalar_select %p255, %s15, 2
          %s257 = smul.addr %s256, 8
          %s258 = scalar_lea.vmem %s1, %s257
        $region40: #{dynamics_forward.4} parent=31 // pred_fallthru
          _
      $region32: #{dynamics_forward.4} parent=5 // pred_fallthru
        _
      %p259 = scmp.le.s32.totalorder 1, %s15
      %p260 = scmp.lt.s32.totalorder %s15, 4
      %p261 = pnand %p259, %p260
      %p262 = pneg %p261
      // Predicated region
      $region41: #{dynamics_forward.4} parent=5 // pred_check
        _
      $region42: #{dynamics_forward.4} parent=5 // pred_check_branch
        %264 = sbr.rel (%p261) target = $region44
      $region43: #{dynamics_forward.4} parent=5 // pred_region
        %s265 = ssub.s32 %s15, 1
        // Predicated region
        $region45: #{dynamics_forward.4} parent=43 // pred_check
          %p266 = pneg %p130
        $region46: #{dynamics_forward.4} parent=43 // pred_check_branch
          %268 = sbr.rel (%p266) target = $region48
        $region47: #{dynamics_forward.4} parent=43 // pred_region
          %269 = dma.done [#allocation3], 8192
        $region48: #{dynamics_forward.4} parent=43 // pred_fallthru
          _
        %p270 = scmp.lt.s32.totalorder %s20, 2
        %s271 = scalar_select %p270, %s20, 2
        %s272 = smul.addr %s271, 4
        %s273 = smul.addr %s272, 8
        %s274 = scalar_lea.vmem %s0, %s273
        %p275 = pneg %p41
        %p276 = pneg %p38
        %p277 = scmp.lt.s32.totalorder %s20, 2
        %s278 = scalar_select %p277, %s20, 2
        %s279 = smul.addr %s278, 8
        %s280 = scalar_lea.vmem %s1, %s279
        %p281 = pneg %p67
        %p282 = pneg %p64
        %p283 = pneg %p88
        %p284 = pneg %p85
        %p285 = pneg %p109
        %p286 = pneg %p106
        %p287 = pneg %p130
        %p288 = pneg %p127
        %p289 = pneg %p151
        %p290 = pneg %p148
        %p291 = pneg %p177
        %p292 = pneg %p174
        %p293 = scmp.lt.s32.totalorder %s20, 2
        %s294 = scalar_select %p293, %s20, 2
        %s295 = smul.addr %s294, 8
        %s296 = scalar_lea.vmem %s6, %s295
        %p297 = pneg %p203
        %p298 = pneg %p200
        %p299 = scmp.lt.s32.totalorder %s20, 2
        %s300 = scalar_select %p299, %s20, 2
        %s301 = smul.addr %s300, 2
        %s302 = scalar_lea.vmem %s7, %s301
        %p303 = scmp.lt.s32.totalorder %s20, 2
        %s304 = scalar_select %p303, %s20, 2
        %s305 = smul.addr %s304, 4
        %s306 = smul.addr %s305, 8
        %s307 = scalar_lea.vmem %s0, %s306
        %p308 = scmp.lt.s32.totalorder %s20, 2
        %s309 = scalar_select %p308, %s20, 2
        %s310 = smul.addr %s309, 8
        %s311 = scalar_lea.vmem %s1, %s310
        %p312 = scmp.lt.s32.totalorder %s20, 2
        %s313 = scalar_select %p312, %s20, 2
        %s314 = smul.addr %s313, 8
        %s315 = scalar_lea.vmem %s6, %s314
        %p316 = scmp.lt.s32.totalorder %s20, 2
        %s317 = scalar_select %p316, %s20, 2
        %s318 = smul.addr %s317, 2
        %s319 = scalar_lea.vmem %s7, %s318
        %v320 = vld [vmem:[%s307] sm:$0xff]
        %v321 = vld [vmem:[%s307 + $0x8] sm:$0xff]
        %v322 = vld [vmem:[%s307 + $0x10] sm:$0xff]
        %v323 = vld [vmem:[%s307 + $0x18] sm:$0xff]
        %v324 = vld [vmem:[%s2] sm:$0xf]
        %v326 = vlaneseq
        %v327 = vshrl.u32 %v326, 7
        %v328 = vsub.s32 0, %v327
        %v329 = vrot.slane %v324, %v328
        %v330 = vlaneseq
        %v331 = vshrl.u32 %v330, 7
        %v332 = vsub.s32 1, %v331
        %v333 = vrot.slane %v324, %v332
        %v334 = vlaneseq
        %v335 = vshrl.u32 %v334, 7
        %v336 = vsub.s32 2, %v335
        %v337 = vrot.slane %v324, %v336
        %v338 = vlaneseq
        %v339 = vshrl.u32 %v338, 7
        %v340 = vsub.s32 3, %v339
        %v341 = vrot.slane %v324, %v340
        %v346 = vmul.f32 %v320, %v329
        %v347 = vmul.f32 %v321, %v333
        %v348 = vmul.f32 %v322, %v337
        %v349 = vmul.f32 %v323, %v341
        %v350 = vld [vmem:[%s3] sm:$0xf]
        %v352 = vlaneseq
        %v353 = vshrl.u32 %v352, 7
        %v354 = vsub.s32 0, %v353
        %v355 = vrot.slane %v350, %v354
        %v356 = vlaneseq
        %v357 = vshrl.u32 %v356, 7
        %v358 = vsub.s32 1, %v357
        %v359 = vrot.slane %v350, %v358
        %v360 = vlaneseq
        %v361 = vshrl.u32 %v360, 7
        %v362 = vsub.s32 2, %v361
        %v363 = vrot.slane %v350, %v362
        %v364 = vlaneseq
        %v365 = vshrl.u32 %v364, 7
        %v366 = vsub.s32 3, %v365
        %v367 = vrot.slane %v350, %v366
        %v372 = vadd.f32 %v346, %v355
        %v373 = vadd.f32 %v347, %v359
        %v374 = vadd.f32 %v348, %v363
        %v375 = vadd.f32 %v349, %v367
        %v376 = vld [vmem:[#allocation2] sm:$0xff]
        %v377 = vld [vmem:[#allocation2 + $0x8] sm:$0xff]
        %v378 = vld [vmem:[#allocation2 + $0x10] sm:$0xff]
        %v379 = vld [vmem:[#allocation2 + $0x18] sm:$0xff]
        %v380 = vld [vmem:[#allocation2 + $0x20] sm:$0xff]
        %v381 = vld [vmem:[#allocation2 + $0x28] sm:$0xff]
        %v382 = vld [vmem:[#allocation2 + $0x30] sm:$0xff]
        %v383 = vld [vmem:[#allocation2 + $0x38] sm:$0xff]
        %v384 = vld [vmem:[#allocation2 + $0x40] sm:$0xff]
        %v385 = vld [vmem:[#allocation2 + $0x48] sm:$0xff]
        %v386 = vld [vmem:[#allocation2 + $0x50] sm:$0xff]
        %v387 = vld [vmem:[#allocation2 + $0x58] sm:$0xff]
        %v388 = vld [vmem:[#allocation2 + $0x60] sm:$0xff]
        %v389 = vld [vmem:[#allocation2 + $0x68] sm:$0xff]
        %v390 = vld [vmem:[#allocation2 + $0x70] sm:$0xff]
        %v391 = vld [vmem:[#allocation2 + $0x78] sm:$0xff]
        %v392 = vld [vmem:[#allocation2 + $0x80] sm:$0xff]
        %v393 = vld [vmem:[#allocation2 + $0x88] sm:$0xff]
        %v394 = vld [vmem:[#allocation2 + $0x90] sm:$0xff]
        %v395 = vld [vmem:[#allocation2 + $0x98] sm:$0xff]
        %v396 = vld [vmem:[#allocation2 + $0xa0] sm:$0xff]
        %v397 = vld [vmem:[#allocation2 + $0xa8] sm:$0xff]
        %v398 = vld [vmem:[#allocation2 + $0xb0] sm:$0xff]
        %v399 = vld [vmem:[#allocation2 + $0xb8] sm:$0xff]
        %v400 = vld [vmem:[#allocation2 + $0xc0] sm:$0xff]
        %v401 = vld [vmem:[#allocation2 + $0xc8] sm:$0xff]
        %v402 = vld [vmem:[#allocation2 + $0xd0] sm:$0xff]
        %v403 = vld [vmem:[#allocation2 + $0xd8] sm:$0xff]
        %v404 = vld [vmem:[#allocation2 + $0xe0] sm:$0xff]
        %v405 = vld [vmem:[#allocation2 + $0xe8] sm:$0xff]
        %v406 = vld [vmem:[#allocation2 + $0xf0] sm:$0xff]
        %v407 = vld [vmem:[#allocation2 + $0xf8] sm:$0xff]
        %v408 = vld [vmem:[#allocation2 + $0x100] sm:$0xff]
        %v409 = vld [vmem:[#allocation2 + $0x108] sm:$0xff]
        %v410 = vld [vmem:[#allocation2 + $0x110] sm:$0xff]
        %v411 = vld [vmem:[#allocation2 + $0x118] sm:$0xff]
        %v412 = vld [vmem:[#allocation2 + $0x120] sm:$0xff]
        %v413 = vld [vmem:[#allocation2 + $0x128] sm:$0xff]
        %v414 = vld [vmem:[#allocation2 + $0x130] sm:$0xff]
        %v415 = vld [vmem:[#allocation2 + $0x138] sm:$0xff]
        %v416 = vld [vmem:[#allocation2 + $0x140] sm:$0xff]
        %v417 = vld [vmem:[#allocation2 + $0x148] sm:$0xff]
        %v418 = vld [vmem:[#allocation2 + $0x150] sm:$0xff]
        %v419 = vld [vmem:[#allocation2 + $0x158] sm:$0xff]
        %v420 = vld [vmem:[#allocation2 + $0x160] sm:$0xff]
        %v421 = vld [vmem:[#allocation2 + $0x168] sm:$0xff]
        %v422 = vld [vmem:[#allocation2 + $0x170] sm:$0xff]
        %v423 = vld [vmem:[#allocation2 + $0x178] sm:$0xff]
        %v424 = vld [vmem:[#allocation2 + $0x180] sm:$0xff]
        %v425 = vld [vmem:[#allocation2 + $0x188] sm:$0xff]
        %v426 = vld [vmem:[#allocation2 + $0x190] sm:$0xff]
        %v427 = vld [vmem:[#allocation2 + $0x198] sm:$0xff]
        %v428 = vld [vmem:[#allocation2 + $0x1a0] sm:$0xff]
        %v429 = vld [vmem:[#allocation2 + $0x1a8] sm:$0xff]
        %v430 = vld [vmem:[#allocation2 + $0x1b0] sm:$0xff]
        %v431 = vld [vmem:[#allocation2 + $0x1b8] sm:$0xff]
        %v432 = vld [vmem:[#allocation2 + $0x1c0] sm:$0xff]
        %v433 = vld [vmem:[#allocation2 + $0x1c8] sm:$0xff]
        %v434 = vld [vmem:[#allocation2 + $0x1d0] sm:$0xff]
        %v435 = vld [vmem:[#allocation2 + $0x1d8] sm:$0xff]
        %v436 = vld [vmem:[#allocation2 + $0x1e0] sm:$0xff]
        %v437 = vld [vmem:[#allocation2 + $0x1e8] sm:$0xff]
        %v438 = vld [vmem:[#allocation2 + $0x1f0] sm:$0xff]
        %v439 = vld [vmem:[#allocation2 + $0x1f8] sm:$0xff]
        %v440 = vld [vmem:[%s5] sm:$0x1]
        %v442 = vlaneseq
        %v443 = vshrl.u32 %v442, 7
        %v444 = vsub.s32 0, %v443
        %v445 = vrot.slane %v440, %v444
        %447 = vmatprep.subr.mxu0 0.0
        %448 = vmatpush1.msra.mxu0 %v391
        %449 = vmatprep.subr.mxu0 0.0
        %450 = vmatpush1.msra.mxu0 %v390
        %451 = vmatprep.subr.mxu0 0.0
        %452 = vmatpush1.msra.mxu0 %v389
        %453 = vmatprep.subr.mxu0 0.0
        %454 = vmatpush1.msra.mxu0 %v388
        %455 = vmatprep.subr.mxu0 0.0
        %456 = vmatpush1.msra.mxu0 %v387
        %457 = vmatprep.subr.mxu0 0.0
        %458 = vmatpush1.msra.mxu0 %v386
        %459 = vmatprep.subr.mxu0 0.0
        %460 = vmatpush1.msra.mxu0 %v385
        %461 = vmatprep.subr.mxu0 0.0
        %462 = vmatpush1.msra.mxu0 %v384
        %463 = vmatprep.subr.mxu0 0.0
        %464 = vmatpush1.msra.mxu0 %v383
        %465 = vmatprep.subr.mxu0 0.0
        %466 = vmatpush1.msra.mxu0 %v382
        %467 = vmatprep.subr.mxu0 0.0
        %468 = vmatpush1.msra.mxu0 %v381
        %469 = vmatprep.subr.mxu0 0.0
        %470 = vmatpush1.msra.mxu0 %v380
        %471 = vmatprep.subr.mxu0 0.0
        %472 = vmatpush1.msra.mxu0 %v379
        %473 = vmatprep.subr.mxu0 0.0
        %474 = vmatpush1.msra.mxu0 %v378
        %475 = vmatprep.subr.mxu0 0.0
        %476 = vmatpush1.msra.mxu0 %v377
        %477 = vmatprep.subr.mxu0 0.0
        %478 = vmatpush1.msra.mxu0 %v376
        %479 = vmatprep.subr.mxu0 0.0
        %480 = vmatpush2.msra.mxu0 %v407
        %481 = vmatprep.subr.mxu0 0.0
        %482 = vmatpush2.msra.mxu0 %v406
        %483 = vmatprep.subr.mxu0 0.0
        %484 = vmatpush2.msra.mxu0 %v405
        %485 = vmatprep.subr.mxu0 0.0
        %486 = vmatpush2.msra.mxu0 %v404
        %487 = vmatprep.subr.mxu0 0.0
        %488 = vmatpush2.msra.mxu0 %v403
        %489 = vmatprep.subr.mxu0 0.0
        %490 = vmatpush2.msra.mxu0 %v402
        %491 = vmatprep.subr.mxu0 0.0
        %492 = vmatpush2.msra.mxu0 %v401
        %493 = vmatprep.subr.mxu0 0.0
        %494 = vmatpush2.msra.mxu0 %v400
        %495 = vmatprep.subr.mxu0 0.0
        %496 = vmatpush2.msra.mxu0 %v399
        %497 = vmatprep.subr.mxu0 0.0
        %498 = vmatpush2.msra.mxu0 %v398
        %499 = vmatprep.subr.mxu0 0.0
        %500 = vmatpush2.msra.mxu0 %v397
        %501 = vmatprep.subr.mxu0 0.0
        %502 = vmatpush2.msra.mxu0 %v396
        %503 = vmatprep.subr.mxu0 0.0
        %504 = vmatpush2.msra.mxu0 %v395
        %505 = vmatprep.subr.mxu0 0.0
        %506 = vmatpush2.msra.mxu0 %v394
        %507 = vmatprep.subr.mxu0 0.0
        %508 = vmatpush2.msra.mxu0 %v393
        %509 = vmatprep.subr.mxu0 0.0
        %510 = vmatpush2.msra.mxu0 %v392
        %511 = vmatprep.mubr.f32.mxu0 %v373
        %512 = vmatmul.mubr.f32.gmra.mxu0 %v372
        %v513 = vpop.f32.mrf.mxu0
        %v514 = vadd.f32 %v445, %v513
        %v515 = vpop.f32.mrf.mxu0
        %516 = vdwg.mxu0
        %517 = vmatprep.subr.mxu0 0.0
        %518 = vmatpush1.msra.mxu0 %v423
        %519 = vmatprep.subr.mxu0 0.0
        %520 = vmatpush1.msra.mxu0 %v422
        %521 = vmatprep.subr.mxu0 0.0
        %522 = vmatpush1.msra.mxu0 %v421
        %523 = vmatprep.subr.mxu0 0.0
        %524 = vmatpush1.msra.mxu0 %v420
        %525 = vmatprep.subr.mxu0 0.0
        %526 = vmatpush1.msra.mxu0 %v419
        %527 = vmatprep.subr.mxu0 0.0
        %528 = vmatpush1.msra.mxu0 %v418
        %529 = vmatprep.subr.mxu0 0.0
        %530 = vmatpush1.msra.mxu0 %v417
        %531 = vmatprep.subr.mxu0 0.0
        %532 = vmatpush1.msra.mxu0 %v416
        %533 = vmatprep.subr.mxu0 0.0
        %534 = vmatpush1.msra.mxu0 %v415
        %535 = vmatprep.subr.mxu0 0.0
        %536 = vmatpush1.msra.mxu0 %v414
        %537 = vmatprep.subr.mxu0 0.0
        %538 = vmatpush1.msra.mxu0 %v413
        %539 = vmatprep.subr.mxu0 0.0
        %540 = vmatpush1.msra.mxu0 %v412
        %541 = vmatprep.subr.mxu0 0.0
        %542 = vmatpush1.msra.mxu0 %v411
        %543 = vmatprep.subr.mxu0 0.0
        %544 = vmatpush1.msra.mxu0 %v410
        %545 = vmatprep.subr.mxu0 0.0
        %546 = vmatpush1.msra.mxu0 %v409
        %547 = vmatprep.subr.mxu0 0.0
        %548 = vmatpush1.msra.mxu0 %v408
        %549 = vmatprep.subr.mxu0 0.0
        %550 = vmatpush2.msra.mxu0 %v439
        %551 = vmatprep.subr.mxu0 0.0
        %552 = vmatpush2.msra.mxu0 %v438
        %553 = vmatprep.subr.mxu0 0.0
        %554 = vmatpush2.msra.mxu0 %v437
        %555 = vmatprep.subr.mxu0 0.0
        %556 = vmatpush2.msra.mxu0 %v436
        %557 = vmatprep.subr.mxu0 0.0
        %558 = vmatpush2.msra.mxu0 %v435
        %559 = vmatprep.subr.mxu0 0.0
        %560 = vmatpush2.msra.mxu0 %v434
        %561 = vmatprep.subr.mxu0 0.0
        %562 = vmatpush2.msra.mxu0 %v433
        %563 = vmatprep.subr.mxu0 0.0
        %564 = vmatpush2.msra.mxu0 %v432
        %565 = vmatprep.subr.mxu0 0.0
        %566 = vmatpush2.msra.mxu0 %v431
        %567 = vmatprep.subr.mxu0 0.0
        %568 = vmatpush2.msra.mxu0 %v430
        %569 = vmatprep.subr.mxu0 0.0
        %570 = vmatpush2.msra.mxu0 %v429
        %571 = vmatprep.subr.mxu0 0.0
        %572 = vmatpush2.msra.mxu0 %v428
        %573 = vmatprep.subr.mxu0 0.0
        %574 = vmatpush2.msra.mxu0 %v427
        %575 = vmatprep.subr.mxu0 0.0
        %576 = vmatpush2.msra.mxu0 %v426
        %577 = vmatprep.subr.mxu0 0.0
        %578 = vmatpush2.msra.mxu0 %v425
        %579 = vmatprep.subr.mxu0 0.0
        %580 = vmatpush2.msra.mxu0 %v424
        %581 = vmatprep.mubr.f32.mxu0 %v375
        %582 = vmatmul.mubr.f32.gmra.mxu0 %v374
        %v583 = vpop.f32.mrf.mxu0
        %v584 = vadd.f32 %v514, %v583
        %v585 = vpop.f32.mrf.mxu0
        %586 = vdwg.mxu0
        %vm587 = vcmp.ge.f32.partialorder %v584, 0.0
        %v588 = vmul.f32 %v584, 0.01
        %v589 = vsel %vm587, %v584, %v588
        %590 = vst [vmem:[%s315] sm:$0xff] %v589
        %v591 = vld [vmem:[%s311] sm:$0xff]
        %593 = vset.pattern.permute.xlu0 0
        %594 = vperm.xlu0 %593, %v591
        %v595 = vpop.permute.xlu0 %594
        %v597 = vmul.f32 %v589, %v595
        %v598 = vrot.slane %v597, 4
        %v599 = vadd.f32 %v597, %v598
        %v600 = vrot.slane %v599, 2
        %v601 = vadd.f32 %v599, %v600
        %v602 = vrot.slane %v601, 1
        %v603 = vadd.f32 %v601, %v602
        %v604 = vmul.f32 %v597, %v589
        %v605 = vrot.slane %v604, 4
        %v606 = vadd.f32 %v604, %v605
        %v607 = vrot.slane %v606, 2
        %v608 = vadd.f32 %v606, %v607
        %v609 = vrot.slane %v608, 1
        %v610 = vadd.f32 %v608, %v609
        %vm611 = vcmask 1040384
        %v612 = vsel %vm611, %v603, %v610
        %613 = vst [vmem:[%s319] sm:$0x3] %v612
        %p614 = scmp.lt.s32.totalorder %s20, 2
        %s615 = scalar_select %p614, %s20, 2
        %s616 = smul.addr %s615, 8
        %s617 = scalar_lea.vmem %s6, %s616
        %p618 = scmp.lt.s32.totalorder %s20, 2
        %s619 = scalar_select %p618, %s20, 2
        %s620 = smul.addr %s619, 2
        %s621 = scalar_lea.vmem %s7, %s620
        // Predicated region
        $region49: #{dynamics_forward.4} parent=43 // pred_check
          %p622 = pneg %p174
        $region50: #{dynamics_forward.4} parent=43 // pred_check_branch
          %624 = sbr.rel (%p622) target = $region52
        $region51: #{dynamics_forward.4} parent=43 // pred_region
          _
        $region52: #{dynamics_forward.4} parent=43 // pred_fallthru
          _
        // Predicated region
        $region53: #{dynamics_forward.4} parent=43 // pred_check
          %p625 = pneg %p200
        $region54: #{dynamics_forward.4} parent=43 // pred_check_branch
          %627 = sbr.rel (%p625) target = $region56
        $region55: #{dynamics_forward.4} parent=43 // pred_region
          _
        $region56: #{dynamics_forward.4} parent=43 // pred_fallthru
          _
      $region44: #{dynamics_forward.4} parent=5 // pred_fallthru
        _
      %p628 = scmp.le.s32.totalorder 2, %s15
      // Predicated region
      $region57: #{dynamics_forward.4} parent=5 // pred_check
        %p629 = pneg %p628
      $region58: #{dynamics_forward.4} parent=5 // pred_check_branch
        %631 = sbr.rel (%p629) target = $region60
      $region59: #{dynamics_forward.4} parent=5 // pred_region
        %s632 = ssub.s32 %s15, 2
        // Predicated region
        $region61: #{dynamics_forward.4} parent=59 // pred_check
          %p633 = pneg %p180
        $region62: #{dynamics_forward.4} parent=59 // pred_check_branch
          %635 = sbr.rel (%p633) target = $region64
        $region63: #{dynamics_forward.4} parent=59 // pred_region
          %p636 = scmp.lt.s32.totalorder %s21, 2
          %s637 = scalar_select %p636, %s21, 2
          %s638 = smul.addr %s637, 8
          %s639 = scalar_lea.vmem %s6, %s638
        $region64: #{dynamics_forward.4} parent=59 // pred_fallthru
          _
        // Predicated region
        $region65: #{dynamics_forward.4} parent=59 // pred_check
          %p640 = pneg %p206
        $region66: #{dynamics_forward.4} parent=59 // pred_check_branch
          %642 = sbr.rel (%p640) target = $region68
        $region67: #{dynamics_forward.4} parent=59 // pred_region
          %p643 = scmp.lt.s32.totalorder %s21, 2
          %s644 = scalar_select %p643, %s21, 2
          %s645 = smul.addr %s644, 2
          %s646 = scalar_lea.vmem %s7, %s645
        $region68: #{dynamics_forward.4} parent=59 // pred_fallthru
          _
      $region60: #{dynamics_forward.4} parent=5 // pred_fallthru
        _
    $region6: #{dynamics_forward.4} parent=1 // loop_footer
      %s19 = sadd.s32 1, %s15
    $region7: #{dynamics_forward.4} parent=1 // loop_footer_branch
      %14 = sbr.rel target = $region3
    $region8: #{dynamics_forward.4} parent=1 // loop_exit
      _
    %647 = vsyncpa [#allocation3], 1
    %s648 = scalar_lea.sflag [#allocation3], 1
    %649 = vsyncpa %s648, 1

// kernel: dynamics_forward.3
$region0: #{dynamics_forward.3}
  #allocation0 [shape = 'u32[]', space=smem, size = 0x4, offset = 0x4, fixed_abs, tag = 'smem constant byte address 0x4 - core index']
  #allocation1 [shape = 'u32[144,128]{1,0:T(1,128)}', space=vmem, size = 0x12000, scoped, tag = 'internal scratch']
  %s0 = inlined_call_operand.vmem [shape: f32[24,5], index: 0, kind: input, shape index: {}]
  %s1 = inlined_call_operand.vmem [shape: f32[24,1], index: 1, kind: input, shape index: {}]
  %s2 = inlined_call_operand.vmem [shape: f32[5,512], index: 2, kind: input, shape index: {}]
  %s3 = inlined_call_operand.vmem [shape: f32[1,512], index: 3, kind: input, shape index: {}]
  %s4 = inlined_call_operand.vmem [shape: f32[24,512], index: 4, kind: output, shape index: {0}]
  %s5 = inlined_call_operand.vmem [shape: f32[3,2,512], index: 5, kind: output, shape index: {1}]
  %6 = xla_tuple %s4, %s5
  %s7 = sld [smem:[#allocation0]]
  $region57: #{dynamics_forward.3} parent=0
    _
  %s9 = ssub.s32 1, %s7
  %s10 = scalar_select 0, %s9, %s7
  loop: start=0, step=1, limit=5
  $region2: #{dynamics_forward.3} parent=0 // loop_pre_header
    _
  $region3: #{dynamics_forward.3} parent=0 // loop_header
    %s12 = sphi 0, %s16
    %p13 = scmp.ge.s32.totalorder %s12, 5
    %s22 = sphi 0, %s24
    %s25 = sphi 0, %s22
    %s26 = sphi 0, %s25
    %s42 = sphi 0, %s26
    %s48 = sphi 0, %s50
    %s51 = sphi 0, %s48
    %s52 = sphi 0, %s51
    %s68 = sphi 0, %s52
    %s72 = sphi 0, %s72
    %s74 = sphi 0, %s72
    %s75 = sphi 0, %s74
    %s89 = sphi 0, %s75
    %s93 = sphi 0, %s93
    %s95 = sphi 0, %s93
    %s96 = sphi 0, %s95
    %s110 = sphi 0, %s96
    %s116 = sphi 0, %s118
    %s119 = sphi 0, %s116
    %s120 = sphi 0, %s119
    %s136 = sphi 0, %s120
    %s142 = sphi 0, %s144
    %s145 = sphi 0, %s142
    %s146 = sphi 0, %s145
    %s162 = sphi 0, %s146
  $region4: #{dynamics_forward.3} parent=0 // loop_header_branch
    %15 = sbr.rel (%p13) target = $region8
  $region5: #{dynamics_forward.3} parent=0 // loop_body
    %s17 = ssub.s32 %s12, 1
    %s18 = ssub.s32 %s12, 2
    %s19 = sadd.s32 %s12, 1
    %s20 = ssub.s32 %s12, %s19
    %p21 = scmp.eq.s32.totalorder %s20, 0
    %s23 = sadd.s32 %s22, 1
    %s24 = scalar_select %p21, %s22, %s23
    %p27 = pneg %p21
    %p28 = scmp.eq.s32.totalorder %s12, 2
    %p29 = por %p27, %p28
    %p30 = scmp.ne.s32.totalorder %s22, %s25
    %p31 = scmp.eq.s32.totalorder %s12, 0
    %p32 = por %p30, %p31
    %p33 = scmp.ne.s32.totalorder %s22, %s25
    %p34 = scmp.eq.s32.totalorder %s17, 2
    %p35 = por %p33, %p34
    %p36 = scmp.ne.s32.totalorder %s25, %s26
    %p37 = scmp.eq.s32.totalorder %s17, 0
    %p38 = por %p36, %p37
    %p39 = scmp.ne.s32.totalorder %s25, %s26
    %p40 = scmp.eq.s32.totalorder %s18, 2
    %p41 = por %p39, %p40
    %p43 = scmp.ne.s32.totalorder %s26, %s42
    %p44 = scmp.eq.s32.totalorder %s18, 0
    %p45 = por %p43, %p44
    %s46 = ssub.s32 %s12, %s19
    %p47 = scmp.eq.s32.totalorder %s46, 0
    %s49 = sadd.s32 %s48, 1
    %s50 = scalar_select %p47, %s48, %s49
    %p53 = pneg %p47
    %p54 = scmp.eq.s32.totalorder %s12, 2
    %p55 = por %p53, %p54
    %p56 = scmp.ne.s32.totalorder %s48, %s51
    %p57 = scmp.eq.s32.totalorder %s12, 0
    %p58 = por %p56, %p57
    %p59 = scmp.ne.s32.totalorder %s48, %s51
    %p60 = scmp.eq.s32.totalorder %s17, 2
    %p61 = por %p59, %p60
    %p62 = scmp.ne.s32.totalorder %s51, %s52
    %p63 = scmp.eq.s32.totalorder %s17, 0
    %p64 = por %p62, %p63
    %p65 = scmp.ne.s32.totalorder %s51, %s52
    %p66 = scmp.eq.s32.totalorder %s18, 2
    %p67 = por %p65, %p66
    %p69 = scmp.ne.s32.totalorder %s52, %s68
    %p70 = scmp.eq.s32.totalorder %s18, 0
    %p71 = por %p69, %p70
    %s73 = sadd.s32 %s72, 1
    %p76 = scmp.eq.s32.totalorder %s12, 2
    %p77 = scmp.ne.s32.totalorder %s72, %s74
    %p78 = scmp.eq.s32.totalorder %s12, 0
    %p79 = por %p77, %p78
    %p80 = scmp.ne.s32.totalorder %s72, %s74
    %p81 = scmp.eq.s32.totalorder %s17, 2
    %p82 = por %p80, %p81
    %p83 = scmp.ne.s32.totalorder %s74, %s75
    %p84 = scmp.eq.s32.totalorder %s17, 0
    %p85 = por %p83, %p84
    %p86 = scmp.ne.s32.totalorder %s74, %s75
    %p87 = scmp.eq.s32.totalorder %s18, 2
    %p88 = por %p86, %p87
    %p90 = scmp.ne.s32.totalorder %s75, %s89
    %p91 = scmp.eq.s32.totalorder %s18, 0
    %p92 = por %p90, %p91
    %s94 = sadd.s32 %s93, 1
    %p97 = scmp.eq.s32.totalorder %s12, 2
    %p98 = scmp.ne.s32.totalorder %s93, %s95
    %p99 = scmp.eq.s32.totalorder %s12, 0
    %p100 = por %p98, %p99
    %p101 = scmp.ne.s32.totalorder %s93, %s95
    %p102 = scmp.eq.s32.totalorder %s17, 2
    %p103 = por %p101, %p102
    %p104 = scmp.ne.s32.totalorder %s95, %s96
    %p105 = scmp.eq.s32.totalorder %s17, 0
    %p106 = por %p104, %p105
    %p107 = scmp.ne.s32.totalorder %s95, %s96
    %p108 = scmp.eq.s32.totalorder %s18, 2
    %p109 = por %p107, %p108
    %p111 = scmp.ne.s32.totalorder %s96, %s110
    %p112 = scmp.eq.s32.totalorder %s18, 0
    %p113 = por %p111, %p112
    %s114 = ssub.s32 %s12, %s19
    %p115 = scmp.eq.s32.totalorder %s114, 0
    %s117 = sadd.s32 %s116, 1
    %s118 = scalar_select %p115, %s116, %s117
    %p121 = pneg %p115
    %p122 = scmp.eq.s32.totalorder %s12, 2
    %p123 = por %p121, %p122
    %p124 = scmp.ne.s32.totalorder %s116, %s119
    %p125 = scmp.eq.s32.totalorder %s12, 0
    %p126 = por %p124, %p125
    %p127 = scmp.ne.s32.totalorder %s116, %s119
    %p128 = scmp.eq.s32.totalorder %s17, 2
    %p129 = por %p127, %p128
    %p130 = scmp.ne.s32.totalorder %s119, %s120
    %p131 = scmp.eq.s32.totalorder %s17, 0
    %p132 = por %p130, %p131
    %p133 = scmp.ne.s32.totalorder %s119, %s120
    %p134 = scmp.eq.s32.totalorder %s18, 2
    %p135 = por %p133, %p134
    %p137 = scmp.ne.s32.totalorder %s120, %s136
    %p138 = scmp.eq.s32.totalorder %s18, 0
    %p139 = por %p137, %p138
    %s140 = ssub.s32 %s12, %s19
    %p141 = scmp.eq.s32.totalorder %s140, 0
    %s143 = sadd.s32 %s142, 1
    %s144 = scalar_select %p141, %s142, %s143
    %p147 = pneg %p141
    %p148 = scmp.eq.s32.totalorder %s12, 2
    %p149 = por %p147, %p148
    %p150 = scmp.ne.s32.totalorder %s142, %s145
    %p151 = scmp.eq.s32.totalorder %s12, 0
    %p152 = por %p150, %p151
    %p153 = scmp.ne.s32.totalorder %s142, %s145
    %p154 = scmp.eq.s32.totalorder %s17, 2
    %p155 = por %p153, %p154
    %p156 = scmp.ne.s32.totalorder %s145, %s146
    %p157 = scmp.eq.s32.totalorder %s17, 0
    %p158 = por %p156, %p157
    %p159 = scmp.ne.s32.totalorder %s145, %s146
    %p160 = scmp.eq.s32.totalorder %s18, 2
    %p161 = por %p159, %p160
    %p163 = scmp.ne.s32.totalorder %s146, %s162
    %p164 = scmp.eq.s32.totalorder %s18, 0
    %p165 = por %p163, %p164
    %p166 = scmp.le.s32.totalorder 1, %s12
    %p167 = scmp.lt.s32.totalorder %s12, 4
    %p168 = pnand %p166, %p167
    %p169 = pneg %p168
    // Predicated region
    $region9: #{dynamics_forward.3} parent=5 // pred_check
      _
    $region10: #{dynamics_forward.3} parent=5 // pred_check_branch
      %171 = sbr.rel (%p168) target = $region12
    $region11: #{dynamics_forward.3} parent=5 // pred_region
      %s172 = ssub.s32 %s12, 1
      // Predicated region
      $region13: #{dynamics_forward.3} parent=11 // pred_check
        %p173 = pneg %p85
      $region14: #{dynamics_forward.3} parent=11 // pred_check_branch
        %175 = sbr.rel (%p173) target = $region16
      $region15: #{dynamics_forward.3} parent=11 // pred_region
        _
      $region16: #{dynamics_forward.3} parent=11 // pred_fallthru
        _
      // Predicated region
      $region17: #{dynamics_forward.3} parent=11 // pred_check
        %p176 = pneg %p106
      $region18: #{dynamics_forward.3} parent=11 // pred_check_branch
        %178 = sbr.rel (%p176) target = $region20
      $region19: #{dynamics_forward.3} parent=11 // pred_region
        _
      $region20: #{dynamics_forward.3} parent=11 // pred_fallthru
        _
    $region12: #{dynamics_forward.3} parent=5 // pred_fallthru
      _
    %p179 = scmp.lt.s32.totalorder %s12, 3
    // Predicated region
    $region21: #{dynamics_forward.3} parent=5 // pred_check
      %p180 = pneg %p179
    $region22: #{dynamics_forward.3} parent=5 // pred_check_branch
      %182 = sbr.rel (%p180) target = $region24
    $region23: #{dynamics_forward.3} parent=5 // pred_region
      // Predicated region
      $region25: #{dynamics_forward.3} parent=23 // pred_check
        %p183 = pneg %p32
      $region26: #{dynamics_forward.3} parent=23 // pred_check_branch
        %185 = sbr.rel (%p183) target = $region28
      $region27: #{dynamics_forward.3} parent=23 // pred_region
        %p186 = scmp.lt.s32.totalorder %s12, 2
        %s187 = scalar_select %p186, %s12, 2
        %s188 = smul.addr %s187, 8
        %s189 = scalar_lea.vmem %s0, %s188
      $region28: #{dynamics_forward.3} parent=23 // pred_fallthru
        _
      // Predicated region
      $region29: #{dynamics_forward.3} parent=23 // pred_check
        %p190 = pneg %p58
      $region30: #{dynamics_forward.3} parent=23 // pred_check_branch
        %192 = sbr.rel (%p190) target = $region32
      $region31: #{dynamics_forward.3} parent=23 // pred_region
        %p193 = scmp.lt.s32.totalorder %s12, 2
        %s194 = scalar_select %p193, %s12, 2
        %s195 = smul.addr %s194, 8
        %s196 = scalar_lea.vmem %s1, %s195
      $region32: #{dynamics_forward.3} parent=23 // pred_fallthru
        _
    $region24: #{dynamics_forward.3} parent=5 // pred_fallthru
      _
    %p197 = scmp.le.s32.totalorder 1, %s12
    %p198 = scmp.lt.s32.totalorder %s12, 4
    %p199 = pnand %p197, %p198
    %p200 = pneg %p199
    // Predicated region
    $region33: #{dynamics_forward.3} parent=5 // pred_check
      _
    $region34: #{dynamics_forward.3} parent=5 // pred_check_branch
      %202 = sbr.rel (%p199) target = $region36
    $region35: #{dynamics_forward.3} parent=5 // pred_region
      %s203 = ssub.s32 %s12, 1
      %p204 = scmp.lt.s32.totalorder %s17, 2
      %s205 = scalar_select %p204, %s17, 2
      %s206 = smul.addr %s205, 8
      %s207 = scalar_lea.vmem %s0, %s206
      %p208 = pneg %p38
      %p209 = pneg %p35
      %p210 = scmp.lt.s32.totalorder %s17, 2
      %s211 = scalar_select %p210, %s17, 2
      %s212 = smul.addr %s211, 8
      %s213 = scalar_lea.vmem %s1, %s212
      %p214 = pneg %p64
      %p215 = pneg %p61
      %p216 = pneg %p85
      %p217 = pneg %p82
      %p218 = pneg %p106
      %p219 = pneg %p103
      %p220 = pneg %p132
      %p221 = pneg %p129
      %p222 = scmp.lt.s32.totalorder %s17, 2
      %s223 = scalar_select %p222, %s17, 2
      %s224 = smul.addr %s223, 4
      %s225 = smul.addr %s224, 8
      %s226 = scalar_lea.vmem %s4, %s225
      %p227 = pneg %p158
      %p228 = pneg %p155
      %p229 = scmp.lt.s32.totalorder %s17, 2
      %s230 = scalar_select %p229, %s17, 2
      %s231 = smul.addr %s230, 4
      %s232 = smul.addr %s231, 2
      %s233 = scalar_lea.vmem %s5, %s232
      %p234 = scmp.lt.s32.totalorder %s17, 2
      %s235 = scalar_select %p234, %s17, 2
      %s236 = smul.addr %s235, 8
      %s237 = scalar_lea.vmem %s0, %s236
      %p238 = scmp.lt.s32.totalorder %s17, 2
      %s239 = scalar_select %p238, %s17, 2
      %s240 = smul.addr %s239, 8
      %s241 = scalar_lea.vmem %s1, %s240
      %p242 = scmp.lt.s32.totalorder %s17, 2
      %s243 = scalar_select %p242, %s17, 2
      %s244 = smul.addr %s243, 4
      %s245 = smul.addr %s244, 8
      %s246 = scalar_lea.vmem %s4, %s245
      %p247 = scmp.lt.s32.totalorder %s17, 2
      %s248 = scalar_select %p247, %s17, 2
      %s249 = smul.addr %s248, 4
      %s250 = smul.addr %s249, 2
      %s251 = scalar_lea.vmem %s5, %s250
      %v252 = vld [vmem:[%s237] sm:$0xff]
      %v253 = vld [vmem:[%s2] sm:$0x1f]
      %v254 = vld [vmem:[%s2 + $0x8] sm:$0x1f]
      %v255 = vld [vmem:[%s2 + $0x10] sm:$0x1f]
      %v256 = vld [vmem:[%s2 + $0x18] sm:$0x1f]
      %v257 = vld [vmem:[%s3] sm:$0xf]
      %v259 = vlaneseq
      %v260 = vshrl.u32 %v259, 7
      %v261 = vsub.s32 0, %v260
      %v262 = vrot.slane %v257, %v261
      %v263 = vlaneseq
      %v264 = vshrl.u32 %v263, 7
      %v265 = vsub.s32 1, %v264
      %v266 = vrot.slane %v257, %v265
      %v267 = vlaneseq
      %v268 = vshrl.u32 %v267, 7
      %v269 = vsub.s32 2, %v268
      %v270 = vrot.slane %v257, %v269
      %v271 = vlaneseq
      %v272 = vshrl.u32 %v271, 7
      %v273 = vsub.s32 3, %v272
      %v274 = vrot.slane %v257, %v273
      %vm279 = vcmask 39936
      %v281 = vsel %vm279, %v252, 0
      %vm283 = vcmask 1044480
      %v285 = vsel %vm283, %v253, 0
      %v288 = vsel %vm283, %v254, 0
      %v291 = vsel %vm283, %v255, 0
      %v294 = vsel %vm283, %v256, 0
      %296 = vmatprep.subr.mxu0 0.0
      %297 = vmatpush1.msra.mxu0 0.0
      %298 = vmatprep.subr.mxu0 0.0
      %299 = vmatpush1.msra.mxu0 0.0
      %300 = vmatprep.subr.mxu0 0.0
      %301 = vmatpush1.msra.mxu0 0.0
      %302 = vmatprep.subr.mxu0 0.0
      %303 = vmatpush1.msra.mxu0 0.0
      %304 = vmatprep.subr.mxu0 0.0
      %305 = vmatpush1.msra.mxu0 0.0
      %306 = vmatprep.subr.mxu0 0.0
      %307 = vmatpush1.msra.mxu0 0.0
      %308 = vmatprep.subr.mxu0 0.0
      %309 = vmatpush1.msra.mxu0 0.0
      %310 = vmatprep.subr.mxu0 0.0
      %311 = vmatpush1.msra.mxu0 0.0
      %312 = vmatprep.subr.mxu0 0.0
      %313 = vmatpush1.msra.mxu0 0.0
      %314 = vmatprep.subr.mxu0 0.0
      %315 = vmatpush1.msra.mxu0 0.0
      %316 = vmatprep.subr.mxu0 0.0
      %317 = vmatpush1.msra.mxu0 0.0
      %318 = vmatprep.subr.mxu0 0.0
      %319 = vmatpush1.msra.mxu0 0.0
      %320 = vmatprep.subr.mxu0 0.0
      %321 = vmatpush1.msra.mxu0 0.0
      %322 = vmatprep.subr.mxu0 0.0
      %323 = vmatpush1.msra.mxu0 0.0
      %324 = vmatprep.subr.mxu0 0.0
      %325 = vmatpush1.msra.mxu0 0.0
      %326 = vmatprep.subr.mxu0 %v288
      %327 = vmatpush1.msra.mxu0 %v285
      %328 = vmatprep.subr.mxu0 0.0
      %329 = vmatpush2.msra.mxu0 0.0
      %330 = vmatprep.subr.mxu0 0.0
      %331 = vmatpush2.msra.mxu0 0.0
      %332 = vmatprep.subr.mxu0 0.0
      %333 = vmatpush2.msra.mxu0 0.0
      %334 = vmatprep.subr.mxu0 0.0
      %335 = vmatpush2.msra.mxu0 0.0
      %336 = vmatprep.subr.mxu0 0.0
      %337 = vmatpush2.msra.mxu0 0.0
      %338 = vmatprep.subr.mxu0 0.0
      %339 = vmatpush2.msra.mxu0 0.0
      %340 = vmatprep.subr.mxu0 0.0
      %341 = vmatpush2.msra.mxu0 0.0
      %342 = vmatprep.subr.mxu0 0.0
      %343 = vmatpush2.msra.mxu0 0.0
      %344 = vmatprep.subr.mxu0 0.0
      %345 = vmatpush2.msra.mxu0 0.0
      %346 = vmatprep.subr.mxu0 0.0
      %347 = vmatpush2.msra.mxu0 0.0
      %348 = vmatprep.subr.mxu0 0.0
      %349 = vmatpush2.msra.mxu0 0.0
      %350 = vmatprep.subr.mxu0 0.0
      %351 = vmatpush2.msra.mxu0 0.0
      %352 = vmatprep.subr.mxu0 0.0
      %353 = vmatpush2.msra.mxu0 0.0
      %354 = vmatprep.subr.mxu0 0.0
      %355 = vmatpush2.msra.mxu0 0.0
      %356 = vmatprep.subr.mxu0 0.0
      %357 = vmatpush2.msra.mxu0 0.0
      %358 = vmatprep.subr.mxu0 0.0
      %359 = vmatpush2.msra.mxu0 0.0
      %360 = vmatprep.mubr.f32.mxu0 0.0
      %361 = vmatmul.mubr.f32.gmra.mxu0 %v281
      %v362 = vpop.f32.mrf.mxu0
      %v363 = vadd.f32 %v262, %v362
      %v364 = vpop.f32.mrf.mxu0
      %v365 = vadd.f32 %v266, %v364
      %366 = vdwg.mxu0
      %367 = vmatprep.subr.mxu0 0.0
      %368 = vmatpush1.msra.mxu0 0.0
      %369 = vmatprep.subr.mxu0 0.0
      %370 = vmatpush1.msra.mxu0 0.0
      %371 = vmatprep.subr.mxu0 0.0
      %372 = vmatpush1.msra.mxu0 0.0
      %373 = vmatprep.subr.mxu0 0.0
      %374 = vmatpush1.msra.mxu0 0.0
      %375 = vmatprep.subr.mxu0 0.0
      %376 = vmatpush1.msra.mxu0 0.0
      %377 = vmatprep.subr.mxu0 0.0
      %378 = vmatpush1.msra.mxu0 0.0
      %379 = vmatprep.subr.mxu0 0.0
      %380 = vmatpush1.msra.mxu0 0.0
      %381 = vmatprep.subr.mxu0 0.0
      %382 = vmatpush1.msra.mxu0 0.0
      %383 = vmatprep.subr.mxu0 0.0
      %384 = vmatpush1.msra.mxu0 0.0
      %385 = vmatprep.subr.mxu0 0.0
      %386 = vmatpush1.msra.mxu0 0.0
      %387 = vmatprep.subr.mxu0 0.0
      %388 = vmatpush1.msra.mxu0 0.0
      %389 = vmatprep.subr.mxu0 0.0
      %390 = vmatpush1.msra.mxu0 0.0
      %391 = vmatprep.subr.mxu0 0.0
      %392 = vmatpush1.msra.mxu0 0.0
      %393 = vmatprep.subr.mxu0 0.0
      %394 = vmatpush1.msra.mxu0 0.0
      %395 = vmatprep.subr.mxu0 0.0
      %396 = vmatpush1.msra.mxu0 0.0
      %397 = vmatprep.subr.mxu0 %v294
      %398 = vmatpush1.msra.mxu0 %v291
      %399 = vmatprep.subr.mxu0 0.0
      %400 = vmatpush2.msra.mxu0 0.0
      %401 = vmatprep.subr.mxu0 0.0
      %402 = vmatpush2.msra.mxu0 0.0
      %403 = vmatprep.subr.mxu0 0.0
      %404 = vmatpush2.msra.mxu0 0.0
      %405 = vmatprep.subr.mxu0 0.0
      %406 = vmatpush2.msra.mxu0 0.0
      %407 = vmatprep.subr.mxu0 0.0
      %408 = vmatpush2.msra.mxu0 0.0
      %409 = vmatprep.subr.mxu0 0.0
      %410 = vmatpush2.msra.mxu0 0.0
      %411 = vmatprep.subr.mxu0 0.0
      %412 = vmatpush2.msra.mxu0 0.0
      %413 = vmatprep.subr.mxu0 0.0
      %414 = vmatpush2.msra.mxu0 0.0
      %415 = vmatprep.subr.mxu0 0.0
      %416 = vmatpush2.msra.mxu0 0.0
      %417 = vmatprep.subr.mxu0 0.0
      %418 = vmatpush2.msra.mxu0 0.0
      %419 = vmatprep.subr.mxu0 0.0
      %420 = vmatpush2.msra.mxu0 0.0
      %421 = vmatprep.subr.mxu0 0.0
      %422 = vmatpush2.msra.mxu0 0.0
      %423 = vmatprep.subr.mxu0 0.0
      %424 = vmatpush2.msra.mxu0 0.0
      %425 = vmatprep.subr.mxu0 0.0
      %426 = vmatpush2.msra.mxu0 0.0
      %427 = vmatprep.subr.mxu0 0.0
      %428 = vmatpush2.msra.mxu0 0.0
      %429 = vmatprep.subr.mxu0 0.0
      %430 = vmatpush2.msra.mxu0 0.0
      %431 = vmatprep.mubr.f32.mxu0 0.0
      %432 = vmatmul.mubr.f32.gmra.mxu0 %v281
      %v433 = vpop.f32.mrf.mxu0
      %v434 = vadd.f32 %v270, %v433
      %v435 = vpop.f32.mrf.mxu0
      %v436 = vadd.f32 %v274, %v435
      %437 = vdwg.mxu0
      %vm438 = vcmp.ge.f32.partialorder %v363, 0.0
      %vm439 = vcmp.ge.f32.partialorder %v365, 0.0
      %vm440 = vcmp.ge.f32.partialorder %v434, 0.0
      %vm441 = vcmp.ge.f32.partialorder %v436, 0.0
      %v442 = vmul.f32 %v363, 0.01
      %v443 = vmul.f32 %v365, 0.01
      %v444 = vmul.f32 %v434, 0.01
      %v445 = vmul.f32 %v436, 0.01
      %v446 = vsel %vm438, %v363, %v442
      %v447 = vsel %vm439, %v365, %v443
      %v448 = vsel %vm440, %v434, %v444
      %v449 = vsel %vm441, %v436, %v445
      %450 = vst [vmem:[%s246] sm:$0xff] %v446
      %451 = vst [vmem:[%s246 + $0x8] sm:$0xff] %v447
      %452 = vst [vmem:[%s246 + $0x10] sm:$0xff] %v448
      %453 = vst [vmem:[%s246 + $0x18] sm:$0xff] %v449
      %v454 = vld [vmem:[%s241] sm:$0xff]
      %456 = vset.pattern.permute.xlu0 0
      %457 = vperm.xlu0 %456, %v454
      %v458 = vpop.permute.xlu0 %457
      %v460 = vmul.f32 %v446, %v458
      %v461 = vmul.f32 %v447, %v458
      %v462 = vmul.f32 %v448, %v458
      %v463 = vmul.f32 %v449, %v458
      %v464 = vrot.slane %v460, 4
      %v465 = vadd.f32 %v460, %v464
      %v466 = vrot.slane %v465, 2
      %v467 = vadd.f32 %v465, %v466
      %v468 = vrot.slane %v467, 1
      %v469 = vadd.f32 %v467, %v468
      %v470 = vrot.slane %v461, 4
      %v471 = vadd.f32 %v461, %v470
      %v472 = vrot.slane %v471, 2
      %v473 = vadd.f32 %v471, %v472
      %v474 = vrot.slane %v473, 1
      %v475 = vadd.f32 %v473, %v474
      %v476 = vrot.slane %v462, 4
      %v477 = vadd.f32 %v462, %v476
      %v478 = vrot.slane %v477, 2
      %v479 = vadd.f32 %v477, %v478
      %v480 = vrot.slane %v479, 1
      %v481 = vadd.f32 %v479, %v480
      %v482 = vrot.slane %v463, 4
      %v483 = vadd.f32 %v463, %v482
      %v484 = vrot.slane %v483, 2
      %v485 = vadd.f32 %v483, %v484
      %v486 = vrot.slane %v485, 1
      %v487 = vadd.f32 %v485, %v486
      %v488 = vmul.f32 %v460, %v446
      %v489 = vmul.f32 %v461, %v447
      %v490 = vmul.f32 %v462, %v448
      %v491 = vmul.f32 %v463, %v449
      %v492 = vrot.slane %v488, 4
      %v493 = vadd.f32 %v488, %v492
      %v494 = vrot.slane %v493, 2
      %v495 = vadd.f32 %v493, %v494
      %v496 = vrot.slane %v495, 1
      %v497 = vadd.f32 %v495, %v496
      %v498 = vrot.slane %v489, 4
      %v499 = vadd.f32 %v489, %v498
      %v500 = vrot.slane %v499, 2
      %v501 = vadd.f32 %v499, %v500
      %v502 = vrot.slane %v501, 1
      %v503 = vadd.f32 %v501, %v502
      %v504 = vrot.slane %v490, 4
      %v505 = vadd.f32 %v490, %v504
      %v506 = vrot.slane %v505, 2
      %v507 = vadd.f32 %v505, %v506
      %v508 = vrot.slane %v507, 1
      %v509 = vadd.f32 %v507, %v508
      %v510 = vrot.slane %v491, 4
      %v511 = vadd.f32 %v491, %v510
      %v512 = vrot.slane %v511, 2
      %v513 = vadd.f32 %v511, %v512
      %v514 = vrot.slane %v513, 1
      %v515 = vadd.f32 %v513, %v514
      %vm516 = vcmask 1040384
      %v517 = vsel %vm516, %v469, %v497
      %v518 = vsel %vm516, %v475, %v503
      %v519 = vsel %vm516, %v481, %v509
      %v520 = vsel %vm516, %v487, %v515
      %v525 = vcombine.low %v517, %v518
      %v526 = vcombine.low %v519, %v520
      %v528 = vunpack.c.l.s4 1983009808
      %v529 = vunpack.c.0.s8 %v528
      %v530 = vlaneseq
      %v531 = vshrl.u32 %v530, 7
      %v532 = vsub.s32 %v529, %v531
      %v533 = vrot.slane %v525, %v532
      %v535 = vunpack.c.l.s4 1983009808
      %v536 = vunpack.c.0.s8 %v535
      %v537 = vlaneseq
      %v538 = vshrl.u32 %v537, 7
      %v539 = vsub.s32 %v536, %v538
      %v540 = vrot.slane %v526, %v539
      %v541 = vcombine.low %v533, %v540
      %543 = vst [vmem:[%s251] sm:$0xff] %v541
      %p544 = scmp.lt.s32.totalorder %s17, 2
      %s545 = scalar_select %p544, %s17, 2
      %s546 = smul.addr %s545, 4
      %s547 = smul.addr %s546, 8
      %s548 = scalar_lea.vmem %s4, %s547
      %p549 = scmp.lt.s32.totalorder %s17, 2
      %s550 = scalar_select %p549, %s17, 2
      %s551 = smul.addr %s550, 4
      %s552 = smul.addr %s551, 2
      %s553 = scalar_lea.vmem %s5, %s552
      // Predicated region
      $region37: #{dynamics_forward.3} parent=35 // pred_check
        %p554 = pneg %p129
      $region38: #{dynamics_forward.3} parent=35 // pred_check_branch
        %556 = sbr.rel (%p554) target = $region40
      $region39: #{dynamics_forward.3} parent=35 // pred_region
        _
      $region40: #{dynamics_forward.3} parent=35 // pred_fallthru
        _
      // Predicated region
      $region41: #{dynamics_forward.3} parent=35 // pred_check
        %p557 = pneg %p155
      $region42: #{dynamics_forward.3} parent=35 // pred_check_branch
        %559 = sbr.rel (%p557) target = $region44
      $region43: #{dynamics_forward.3} parent=35 // pred_region
        _
      $region44: #{dynamics_forward.3} parent=35 // pred_fallthru
        _
    $region36: #{dynamics_forward.3} parent=5 // pred_fallthru
      _
    %p560 = scmp.le.s32.totalorder 2, %s12
    // Predicated region
    $region45: #{dynamics_forward.3} parent=5 // pred_check
      %p561 = pneg %p560
    $region46: #{dynamics_forward.3} parent=5 // pred_check_branch
      %563 = sbr.rel (%p561) target = $region48
    $region47: #{dynamics_forward.3} parent=5 // pred_region
      %s564 = ssub.s32 %s12, 2
      // Predicated region
      $region49: #{dynamics_forward.3} parent=47 // pred_check
        %p565 = pneg %p135
      $region50: #{dynamics_forward.3} parent=47 // pred_check_branch
        %567 = sbr.rel (%p565) target = $region52
      $region51: #{dynamics_forward.3} parent=47 // pred_region
        %p568 = scmp.lt.s32.totalorder %s18, 2
        %s569 = scalar_select %p568, %s18, 2
        %s570 = smul.addr %s569, 4
        %s571 = smul.addr %s570, 8
        %s572 = scalar_lea.vmem %s4, %s571
      $region52: #{dynamics_forward.3} parent=47 // pred_fallthru
        _
      // Predicated region
      $region53: #{dynamics_forward.3} parent=47 // pred_check
        %p573 = pneg %p161
      $region54: #{dynamics_forward.3} parent=47 // pred_check_branch
        %575 = sbr.rel (%p573) target = $region56
      $region55: #{dynamics_forward.3} parent=47 // pred_region
        %p576 = scmp.lt.s32.totalorder %s18, 2
        %s577 = scalar_select %p576, %s18, 2
        %s578 = smul.addr %s577, 4
        %s579 = smul.addr %s578, 2
        %s580 = scalar_lea.vmem %s5, %s579
      $region56: #{dynamics_forward.3} parent=47 // pred_fallthru
        _
    $region48: #{dynamics_forward.3} parent=5 // pred_fallthru
      _
  $region6: #{dynamics_forward.3} parent=0 // loop_footer
    %s16 = sadd.s32 1, %s12
  $region7: #{dynamics_forward.3} parent=0 // loop_footer_branch
    %11 = sbr.rel target = $region3
  $region8: #{dynamics_forward.3} parent=0 // loop_exit
    _

</llo_original>
